<compile_context>
chip_gen: v7x
topology: tpu7x:2x2x1
jax: 0.10.0
libtpu: 0.0.40
codegen_flags: <defaults>
</compile_context>

<pallas_src>
import functools

import numpy as np
import jax
import jax.numpy as jnp
from jax.experimental import pallas as pl
from jax.experimental.pallas import tpu as pltpu


# ----------------------------------------------------------------------------
# Anchor generation (plain numpy glue; deterministic, standard RPN anchors)
# ----------------------------------------------------------------------------
def generate_anchors(image_size, sub_sample=16, anchor_scale=(8, 16, 32),
                     ratio=(0.5, 1, 2)):
    fh = image_size[0] // sub_sample
    fw = image_size[1] // sub_sample
    anchors = []
    for iy in range(fh):
        cy = (iy + 0.5) * sub_sample
        for ix in range(fw):
            cx = (ix + 0.5) * sub_sample
            for r in ratio:
                for s in anchor_scale:
                    ah = sub_sample * s * np.sqrt(r)
                    aw = sub_sample * s * np.sqrt(1.0 / r)
                    anchors.append([cy - ah / 2., cx - aw / 2.,
                                    cy + ah / 2., cx + aw / 2.])
    return np.asarray(anchors, dtype=np.float32)


# ----------------------------------------------------------------------------
# Pallas kernel: one (row_tile x W) spatial tile of one image
#   x_ref  : (H+2, W+2, Cin)    bf16  padded NHWC feature map (whole image,
#                                     resident across the row-tile grid axis)
#   w3_ref : (9, Cin, Cmid)     bf16  3x3 conv taps as 9 matmul matrices
#   b3_ref : (1, Cmid)          f32
#   wh_ref : (Cmid, Cpad)       bf16  fused 1x1 head [reg | bg | fg | 0-pad]
#   bh_ref : (1, Cpad)          f32
#   out_ref: (row_tile*W, Cpad) f32   packed, lane-dense head outputs
# ----------------------------------------------------------------------------
def rpn_head_kernel(x_ref, w3_ref, b3_ref, wh_ref, bh_ref, out_ref,
                    *, row_tile, w, cin, cmid):
    row0 = pl.multiple_of(pl.program_id(1) * row_tile, row_tile)

    # 3x3 conv via in-kernel im2col: 9 shifted taps, accumulate in f32.
    acc = jnp.zeros((row_tile * w, cmid), jnp.float32)
    k = 0
    for dy in range(3):
        band = x_ref[pl.ds(row0 + dy, row_tile), :, :]      # (row_tile, W+2, Cin)
        for dx in range(3):
            tap = band[:, dx:dx + w, :].reshape(row_tile * w, cin)
            acc = acc + jnp.dot(tap, w3_ref[k],
                                preferred_element_type=jnp.float32)
            k += 1

    # bias + ReLU, cast to bf16 for the head matmul.
    mid = jnp.maximum(acc + b3_ref[...], 0.0).astype(jnp.bfloat16)

    # Fused 1x1 head conv: [reg (4A) | cls_bg (A) | cls_fg (A) | zero pad]
    head = jnp.dot(mid, wh_ref[...], preferred_element_type=jnp.float32)
    out_ref[...] = head + bh_ref[...]


# ----------------------------------------------------------------------------
# Parameter construction (deterministic, mirrors weight_init: N(0, 0.01), b=0)
# ----------------------------------------------------------------------------
def init_rpn_params(key, in_c, mid_c, n_anchor):
    k1, k2, k3 = jax.random.split(key, 3)
    w_rpn = jax.random.normal(k1, (mid_c, in_c, 3, 3), jnp.float32) * 0.01
    b_rpn = jnp.zeros((mid_c,), jnp.float32)
    w_reg = jax.random.normal(k2, (n_anchor * 4, mid_c, 1, 1), jnp.float32) * 0.01
    b_reg = jnp.zeros((n_anchor * 4,), jnp.float32)
    w_cls = jax.random.normal(k3, (n_anchor * 2, mid_c, 1, 1), jnp.float32) * 0.01
    b_cls = jnp.zeros((n_anchor * 2,), jnp.float32)
    return dict(w_rpn=w_rpn, b_rpn=b_rpn, w_reg=w_reg, b_reg=b_reg,
                w_cls=w_cls, b_cls=b_cls)


def _pick_row_tile(h, w, max_rows=2048):
    for th in range(h, 0, -1):
        if h % th == 0 and th * w <= max_rows:
            return th
    return 1


# ----------------------------------------------------------------------------
# Forward wrapper
# ----------------------------------------------------------------------------
def rpn_forward(x_nchw, params, anchor, img_size, scale=1.0, row_tile=None):
    del img_size, scale  # only used by the (untranslated) proposal layer
    n, cin, h, w = x_nchw.shape
    cmid = params["w_rpn"].shape[0]
    a = anchor.shape[0] // (h * w)
    hw = h * w
    th = _pick_row_tile(h, w) if row_tile is None else row_tile
    assert h % th == 0, "row_tile must divide H"

    # NCHW -> NHWC (bf16) + spatial zero-pad of 1 (layout plumbing only).
    xh = jnp.transpose(x_nchw, (0, 2, 3, 1)).astype(jnp.bfloat16)
    xp = jnp.pad(xh, ((0, 0), (1, 1), (1, 1), (0, 0)))            # (N,H+2,W+2,Cin)

    # 3x3 conv weight (Cout,Cin,kh,kw) -> 9 (Cin,Cmid) tap matrices, (dy,dx) order.
    w3 = jnp.transpose(params["w_rpn"], (2, 3, 1, 0)).reshape(9, cin, cmid)
    w3 = w3.astype(jnp.bfloat16)
    b3 = params["b_rpn"].reshape(1, cmid).astype(jnp.float32)

    # Fused 1x1 head: columns = [reg (4A) | cls_bg (A) | cls_fg (A)], padded to 128.
    wreg = params["w_reg"][:, :, 0, 0].T                          # (Cmid, 4A)
    wcls = params["w_cls"][:, :, 0, 0].T                          # (Cmid, 2A)
    wbg, wfg = wcls[:, 0::2], wcls[:, 1::2]
    wh = jnp.concatenate([wreg, wbg, wfg], axis=1)                # (Cmid, 6A)
    bh = jnp.concatenate([params["b_reg"],
                          params["b_cls"][0::2], params["b_cls"][1::2]])
    cout = 6 * a
    cpad = ((cout + 127) // 128) * 128                            # lane-dense output
    wh = jnp.pad(wh, ((0, 0), (0, cpad - cout))).astype(jnp.bfloat16)
    bh = jnp.pad(bh, (0, cpad - cout)).reshape(1, cpad).astype(jnp.float32)

    kernel = functools.partial(rpn_head_kernel,
                               row_tile=th, w=w, cin=cin, cmid=cmid)

    packed = pl.pallas_call(
        kernel,
        out_shape=jax.ShapeDtypeStruct((n, hw, cpad), jnp.float32),
        grid=(n, h // th),
        in_specs=[
            # Whole padded image per batch element; block index constant
            # across the row-tile axis -> DMA'd once, kept resident in VMEM.
            pl.BlockSpec((pl.Squeezed(), h + 2, w + 2, cin),
                         lambda i, j: (i, 0, 0, 0)),
            pl.BlockSpec((9, cin, cmid), lambda i, j: (0, 0, 0)),
            pl.BlockSpec((1, cmid), lambda i, j: (0, 0)),
            pl.BlockSpec((cmid, cpad), lambda i, j: (0, 0)),
            pl.BlockSpec((1, cpad), lambda i, j: (0, 0)),
        ],
        out_specs=pl.BlockSpec((pl.Squeezed(), th * w, cpad),
                               lambda i, j: (i, j, 0)),
        compiler_params=pltpu.CompilerParams(
            dimension_semantics=("parallel", "parallel")),
    )(xp, w3, b3, wh, bh)

    # Un-pack the lane-dense kernel output into the PyTorch module's views.
    loc = packed[:, :, :4 * a]                                    # (N, HW, 4A)
    bg = packed[:, :, 4 * a:5 * a]                                # (N, HW, A)
    fg = packed[:, :, 5 * a:6 * a]                                # (N, HW, A)
    pred_loc = loc.reshape(n, hw * a, 4)
    pred_cls = jnp.stack([bg, fg], axis=-1).reshape(n, hw * a, 2)
    pred_fg_cls = jax.nn.sigmoid(fg - bg).reshape(n, hw * a)      # 2-way softmax fg

    # TODO(synk): rois / roi_indices come from ProposalCreator (numpy NMS on
    # CPU in the reference); not implemented here.
    return pred_loc, pred_cls, pred_fg_cls, anchor


# ----------------------------------------------------------------------------
# Pure-JAX reference (sanity check of kernel semantics)
# ----------------------------------------------------------------------------
def rpn_forward_ref(x_nchw, params, anchor):
    n, cin, h, w = x_nchw.shape
    cmid = params["w_rpn"].shape[0]
    n_anchor = anchor.shape[0] // (h * w)
    mid = jax.lax.conv_general_dilated(
        x_nchw, params["w_rpn"], (1, 1), ((1, 1), (1, 1)),
        dimension_numbers=("NCHW", "OIHW", "NCHW"))
    mid = jax.nn.relu(mid + params["b_rpn"].reshape(1, cmid, 1, 1))
    loc = jax.lax.conv_general_dilated(
        mid, params["w_reg"], (1, 1), ((0, 0), (0, 0)),
        dimension_numbers=("NCHW", "OIHW", "NCHW"))
    loc = loc + params["b_reg"].reshape(1, -1, 1, 1)
    cls = jax.lax.conv_general_dilated(
        mid, params["w_cls"], (1, 1), ((0, 0), (0, 0)),
        dimension_numbers=("NCHW", "OIHW", "NCHW"))
    cls = cls + params["b_cls"].reshape(1, -1, 1, 1)
    loc = jnp.transpose(loc, (0, 2, 3, 1)).reshape(n, -1, 4)
    cls = jnp.transpose(cls, (0, 2, 3, 1))
    sm = jax.nn.softmax(cls.reshape(n, h, w, n_anchor, 2), axis=4)
    fg = sm[..., 1].reshape(n, -1)
    cls = cls.reshape(n, -1, 2)
    return loc, cls, fg


if __name__ == "__main__":
    # Small, module-consistent shapes.
    N, IN_C, MID_C = 2, 32, 32
    H = W = 16
    SUB_SAMPLE = 16
    IMAGE_SIZE = (H * SUB_SAMPLE, W * SUB_SAMPLE)       # -> 16x16 feature map
    ANCHOR_SCALE = [8, 16, 32]
    RATIO = [0.5, 1, 2]
    N_ANCHOR = len(ANCHOR_SCALE) * len(RATIO)           # 9

    key = jax.random.PRNGKey(0)
    kx, kp = jax.random.split(key)
    x = jax.random.normal(kx, (N, IN_C, H, W), jnp.float32)
    params = init_rpn_params(kp, IN_C, MID_C, N_ANCHOR)
    anchor = jnp.asarray(
        generate_anchors(IMAGE_SIZE, SUB_SAMPLE, ANCHOR_SCALE, RATIO))

    # row_tile=8 -> grid (N, 2), each tile is 8*16 = 128 matmul rows.
    pred_loc, pred_cls, pred_fg_cls, anchor_out = rpn_forward(
        x, params, anchor, img_size=IMAGE_SIZE, scale=1.0, row_tile=8)
    jax.block_until_ready((pred_loc, pred_cls, pred_fg_cls))

    # Sanity check against a plain-JAX reference evaluated on bf16-rounded
    # inputs / weights (the kernel runs its matmuls in bf16 with f32 accum).
    def _q(v):
        return v.astype(jnp.bfloat16).astype(jnp.float32)
    params_q = {k: (_q(v) if k.startswith("w_") else v)
                for k, v in params.items()}
    ref_loc, ref_cls, ref_fg = rpn_forward_ref(_q(x), params_q, anchor)

    np.testing.assert_allclose(np.asarray(pred_loc), np.asarray(ref_loc),
                               rtol=2e-2, atol=5e-4)
    np.testing.assert_allclose(np.asarray(pred_cls), np.asarray(ref_cls),
                               rtol=2e-2, atol=5e-4)
    np.testing.assert_allclose(np.asarray(pred_fg_cls), np.asarray(ref_fg),
                               rtol=2e-2, atol=5e-4)

    assert pred_loc.shape == (N, H * W * N_ANCHOR, 4)
    assert pred_cls.shape == (N, H * W * N_ANCHOR, 2)
    assert pred_fg_cls.shape == (N, H * W * N_ANCHOR)
    assert anchor_out.shape == (H * W * N_ANCHOR, 4)
    print("KERNEL_OK")
</pallas_src>

<mosaic_0001>
module attributes {stable_mosaic.version = 11 : i64} {
  func.func @rpn_head_kernel(%arg0: i32, %arg1: i32, %arg2: memref<1x18x18x32xbf16, #tpu.memory_space<vmem>>, %arg3: memref<9x32x32xbf16, #tpu.memory_space<vmem>>, %arg4: memref<1x32xf32, #tpu.memory_space<vmem>>, %arg5: memref<32x128xbf16, #tpu.memory_space<vmem>>, %arg6: memref<1x128xf32, #tpu.memory_space<vmem>>, %arg7: memref<1x128x128xf32, #tpu.memory_space<vmem>>) attributes {dimension_semantics = [#tpu.dimension_semantics<parallel>, #tpu.dimension_semantics<parallel>], iteration_bounds = array<i64: 2, 2>, scalar_prefetch = 0 : i64, scratch_operands = 0 : i64, tpu.core_type = #tpu.core_type<tc>, window_params = [{transform_indices = @transform_0, window_bounds = array<i64: 1, 18, 18, 32>}, {pipeline_mode = #tpu.pipeline_mode<synchronous>, transform_indices = @transform_1, window_bounds = array<i64: 9, 32, 32>}, {pipeline_mode = #tpu.pipeline_mode<synchronous>, transform_indices = @transform_2, window_bounds = array<i64: 1, 32>}, {pipeline_mode = #tpu.pipeline_mode<synchronous>, transform_indices = @transform_3, window_bounds = array<i64: 32, 128>}, {pipeline_mode = #tpu.pipeline_mode<synchronous>, transform_indices = @transform_4, window_bounds = array<i64: 1, 128>}, {transform_indices = @transform_5, window_bounds = array<i64: 1, 128, 128>}]} {
    %c8_i32 = arith.constant 8 : i32
    %0 = arith.muli %arg1, %c8_i32 : i32
    %1 = tpu.assume_multiple %0, 8 : i32
    %cst = arith.constant 0.000000e+00 : f32
    %2 = vector.broadcast %cst : f32 to vector<128x32xf32>
    %c0_i32 = arith.constant 0 : i32
    %3 = arith.addi %1, %c0_i32 : i32
    %c0 = arith.constant 0 : index
    %4 = arith.index_cast %3 : i32 to index
    %c0_0 = arith.constant 0 : index
    %c0_1 = arith.constant 0 : index
    %5 = vector.load %arg2[%c0, %4, %c0_0, %c0_1] : memref<1x18x18x32xbf16, #tpu.memory_space<vmem>>, vector<1x8x18x32xbf16>
    %6 = vector.shape_cast %5 : vector<1x8x18x32xbf16> to vector<8x18x32xbf16>
    %7 = vector.extract_strided_slice %6 {offsets = [0, 0, 0], sizes = [8, 16, 32], strides = [1, 1, 1]} : vector<8x18x32xbf16> to vector<8x16x32xbf16>
    %8 = vector.shape_cast %7 : vector<8x16x32xbf16> to vector<128x32xbf16>
    %c0_2 = arith.constant 0 : index
    %c0_3 = arith.constant 0 : index
    %c0_4 = arith.constant 0 : index
    %9 = vector.load %arg3[%c0_2, %c0_3, %c0_4] : memref<9x32x32xbf16, #tpu.memory_space<vmem>>, vector<1x32x32xbf16>
    %10 = vector.shape_cast %9 : vector<1x32x32xbf16> to vector<32x32xbf16>
    %cst_5 = arith.constant dense<0.000000e+00> : vector<128x32xf32>
    %11 = tpu.matmul %8, %10, %cst_5 {dimension_numbers = #tpu.dot_dimension_numbers<[1], [0], [0], [1], [0, 0, 1, 1], [], []>} : vector<128x32xbf16>, vector<32x32xbf16>, vector<128x32xf32> -> vector<128x32xf32>
    %12 = arith.addf %2, %11 : vector<128x32xf32>
    %13 = vector.extract_strided_slice %6 {offsets = [0, 1, 0], sizes = [8, 16, 32], strides = [1, 1, 1]} : vector<8x18x32xbf16> to vector<8x16x32xbf16>
    %14 = vector.shape_cast %13 : vector<8x16x32xbf16> to vector<128x32xbf16>
    %c1 = arith.constant 1 : index
    %c0_6 = arith.constant 0 : index
    %c0_7 = arith.constant 0 : index
    %15 = vector.load %arg3[%c1, %c0_6, %c0_7] : memref<9x32x32xbf16, #tpu.memory_space<vmem>>, vector<1x32x32xbf16>
    %16 = vector.shape_cast %15 : vector<1x32x32xbf16> to vector<32x32xbf16>
    %cst_8 = arith.constant dense<0.000000e+00> : vector<128x32xf32>
    %17 = tpu.matmul %14, %16, %cst_8 {dimension_numbers = #tpu.dot_dimension_numbers<[1], [0], [0], [1], [0, 0, 1, 1], [], []>} : vector<128x32xbf16>, vector<32x32xbf16>, vector<128x32xf32> -> vector<128x32xf32>
    %18 = arith.addf %12, %17 : vector<128x32xf32>
    %19 = vector.extract_strided_slice %6 {offsets = [0, 2, 0], sizes = [8, 16, 32], strides = [1, 1, 1]} : vector<8x18x32xbf16> to vector<8x16x32xbf16>
    %20 = vector.shape_cast %19 : vector<8x16x32xbf16> to vector<128x32xbf16>
    %c2 = arith.constant 2 : index
    %c0_9 = arith.constant 0 : index
    %c0_10 = arith.constant 0 : index
    %21 = vector.load %arg3[%c2, %c0_9, %c0_10] : memref<9x32x32xbf16, #tpu.memory_space<vmem>>, vector<1x32x32xbf16>
    %22 = vector.shape_cast %21 : vector<1x32x32xbf16> to vector<32x32xbf16>
    %cst_11 = arith.constant dense<0.000000e+00> : vector<128x32xf32>
    %23 = tpu.matmul %20, %22, %cst_11 {dimension_numbers = #tpu.dot_dimension_numbers<[1], [0], [0], [1], [0, 0, 1, 1], [], []>} : vector<128x32xbf16>, vector<32x32xbf16>, vector<128x32xf32> -> vector<128x32xf32>
    %24 = arith.addf %18, %23 : vector<128x32xf32>
    %c1_i32 = arith.constant 1 : i32
    %25 = arith.addi %1, %c1_i32 : i32
    %c0_12 = arith.constant 0 : index
    %26 = arith.index_cast %25 : i32 to index
    %c0_13 = arith.constant 0 : index
    %c0_14 = arith.constant 0 : index
    %27 = vector.load %arg2[%c0_12, %26, %c0_13, %c0_14] : memref<1x18x18x32xbf16, #tpu.memory_space<vmem>>, vector<1x8x18x32xbf16>
    %28 = vector.shape_cast %27 : vector<1x8x18x32xbf16> to vector<8x18x32xbf16>
    %29 = vector.extract_strided_slice %28 {offsets = [0, 0, 0], sizes = [8, 16, 32], strides = [1, 1, 1]} : vector<8x18x32xbf16> to vector<8x16x32xbf16>
    %30 = vector.shape_cast %29 : vector<8x16x32xbf16> to vector<128x32xbf16>
    %c3 = arith.constant 3 : index
    %c0_15 = arith.constant 0 : index
    %c0_16 = arith.constant 0 : index
    %31 = vector.load %arg3[%c3, %c0_15, %c0_16] : memref<9x32x32xbf16, #tpu.memory_space<vmem>>, vector<1x32x32xbf16>
    %32 = vector.shape_cast %31 : vector<1x32x32xbf16> to vector<32x32xbf16>
    %cst_17 = arith.constant dense<0.000000e+00> : vector<128x32xf32>
    %33 = tpu.matmul %30, %32, %cst_17 {dimension_numbers = #tpu.dot_dimension_numbers<[1], [0], [0], [1], [0, 0, 1, 1], [], []>} : vector<128x32xbf16>, vector<32x32xbf16>, vector<128x32xf32> -> vector<128x32xf32>
    %34 = arith.addf %24, %33 : vector<128x32xf32>
    %35 = vector.extract_strided_slice %28 {offsets = [0, 1, 0], sizes = [8, 16, 32], strides = [1, 1, 1]} : vector<8x18x32xbf16> to vector<8x16x32xbf16>
    %36 = vector.shape_cast %35 : vector<8x16x32xbf16> to vector<128x32xbf16>
    %c4 = arith.constant 4 : index
    %c0_18 = arith.constant 0 : index
    %c0_19 = arith.constant 0 : index
    %37 = vector.load %arg3[%c4, %c0_18, %c0_19] : memref<9x32x32xbf16, #tpu.memory_space<vmem>>, vector<1x32x32xbf16>
    %38 = vector.shape_cast %37 : vector<1x32x32xbf16> to vector<32x32xbf16>
    %cst_20 = arith.constant dense<0.000000e+00> : vector<128x32xf32>
    %39 = tpu.matmul %36, %38, %cst_20 {dimension_numbers = #tpu.dot_dimension_numbers<[1], [0], [0], [1], [0, 0, 1, 1], [], []>} : vector<128x32xbf16>, vector<32x32xbf16>, vector<128x32xf32> -> vector<128x32xf32>
    %40 = arith.addf %34, %39 : vector<128x32xf32>
    %41 = vector.extract_strided_slice %28 {offsets = [0, 2, 0], sizes = [8, 16, 32], strides = [1, 1, 1]} : vector<8x18x32xbf16> to vector<8x16x32xbf16>
    %42 = vector.shape_cast %41 : vector<8x16x32xbf16> to vector<128x32xbf16>
    %c5 = arith.constant 5 : index
    %c0_21 = arith.constant 0 : index
    %c0_22 = arith.constant 0 : index
    %43 = vector.load %arg3[%c5, %c0_21, %c0_22] : memref<9x32x32xbf16, #tpu.memory_space<vmem>>, vector<1x32x32xbf16>
    %44 = vector.shape_cast %43 : vector<1x32x32xbf16> to vector<32x32xbf16>
    %cst_23 = arith.constant dense<0.000000e+00> : vector<128x32xf32>
    %45 = tpu.matmul %42, %44, %cst_23 {dimension_numbers = #tpu.dot_dimension_numbers<[1], [0], [0], [1], [0, 0, 1, 1], [], []>} : vector<128x32xbf16>, vector<32x32xbf16>, vector<128x32xf32> -> vector<128x32xf32>
    %46 = arith.addf %40, %45 : vector<128x32xf32>
    %c2_i32 = arith.constant 2 : i32
    %47 = arith.addi %1, %c2_i32 : i32
    %c0_24 = arith.constant 0 : index
    %48 = arith.index_cast %47 : i32 to index
    %c0_25 = arith.constant 0 : index
    %c0_26 = arith.constant 0 : index
    %49 = vector.load %arg2[%c0_24, %48, %c0_25, %c0_26] : memref<1x18x18x32xbf16, #tpu.memory_space<vmem>>, vector<1x8x18x32xbf16>
    %50 = vector.shape_cast %49 : vector<1x8x18x32xbf16> to vector<8x18x32xbf16>
    %51 = vector.extract_strided_slice %50 {offsets = [0, 0, 0], sizes = [8, 16, 32], strides = [1, 1, 1]} : vector<8x18x32xbf16> to vector<8x16x32xbf16>
    %52 = vector.shape_cast %51 : vector<8x16x32xbf16> to vector<128x32xbf16>
    %c6 = arith.constant 6 : index
    %c0_27 = arith.constant 0 : index
    %c0_28 = arith.constant 0 : index
    %53 = vector.load %arg3[%c6, %c0_27, %c0_28] : memref<9x32x32xbf16, #tpu.memory_space<vmem>>, vector<1x32x32xbf16>
    %54 = vector.shape_cast %53 : vector<1x32x32xbf16> to vector<32x32xbf16>
    %cst_29 = arith.constant dense<0.000000e+00> : vector<128x32xf32>
    %55 = tpu.matmul %52, %54, %cst_29 {dimension_numbers = #tpu.dot_dimension_numbers<[1], [0], [0], [1], [0, 0, 1, 1], [], []>} : vector<128x32xbf16>, vector<32x32xbf16>, vector<128x32xf32> -> vector<128x32xf32>
    %56 = arith.addf %46, %55 : vector<128x32xf32>
    %57 = vector.extract_strided_slice %50 {offsets = [0, 1, 0], sizes = [8, 16, 32], strides = [1, 1, 1]} : vector<8x18x32xbf16> to vector<8x16x32xbf16>
    %58 = vector.shape_cast %57 : vector<8x16x32xbf16> to vector<128x32xbf16>
    %c7 = arith.constant 7 : index
    %c0_30 = arith.constant 0 : index
    %c0_31 = arith.constant 0 : index
    %59 = vector.load %arg3[%c7, %c0_30, %c0_31] : memref<9x32x32xbf16, #tpu.memory_space<vmem>>, vector<1x32x32xbf16>
    %60 = vector.shape_cast %59 : vector<1x32x32xbf16> to vector<32x32xbf16>
    %cst_32 = arith.constant dense<0.000000e+00> : vector<128x32xf32>
    %61 = tpu.matmul %58, %60, %cst_32 {dimension_numbers = #tpu.dot_dimension_numbers<[1], [0], [0], [1], [0, 0, 1, 1], [], []>} : vector<128x32xbf16>, vector<32x32xbf16>, vector<128x32xf32> -> vector<128x32xf32>
    %62 = arith.addf %56, %61 : vector<128x32xf32>
    %63 = vector.extract_strided_slice %50 {offsets = [0, 2, 0], sizes = [8, 16, 32], strides = [1, 1, 1]} : vector<8x18x32xbf16> to vector<8x16x32xbf16>
    %64 = vector.shape_cast %63 : vector<8x16x32xbf16> to vector<128x32xbf16>
    %c8 = arith.constant 8 : index
    %c0_33 = arith.constant 0 : index
    %c0_34 = arith.constant 0 : index
    %65 = vector.load %arg3[%c8, %c0_33, %c0_34] : memref<9x32x32xbf16, #tpu.memory_space<vmem>>, vector<1x32x32xbf16>
    %66 = vector.shape_cast %65 : vector<1x32x32xbf16> to vector<32x32xbf16>
    %cst_35 = arith.constant dense<0.000000e+00> : vector<128x32xf32>
    %67 = tpu.matmul %64, %66, %cst_35 {dimension_numbers = #tpu.dot_dimension_numbers<[1], [0], [0], [1], [0, 0, 1, 1], [], []>} : vector<128x32xbf16>, vector<32x32xbf16>, vector<128x32xf32> -> vector<128x32xf32>
    %68 = arith.addf %62, %67 : vector<128x32xf32>
    %c0_36 = arith.constant 0 : index
    %c0_37 = arith.constant 0 : index
    %69 = vector.load %arg4[%c0_36, %c0_37] : memref<1x32xf32, #tpu.memory_space<vmem>>, vector<1x32xf32>
    %70 = vector.broadcast %69 : vector<1x32xf32> to vector<128x32xf32>
    %71 = arith.addf %68, %70 : vector<128x32xf32>
    %cst_38 = arith.constant 0.000000e+00 : f32
    %72 = vector.broadcast %cst_38 : f32 to vector<128x32xf32>
    %73 = arith.maximumf %71, %72 : vector<128x32xf32>
    %74 = arith.truncf %73 : vector<128x32xf32> to vector<128x32xbf16>
    %c0_39 = arith.constant 0 : index
    %c0_40 = arith.constant 0 : index
    %75 = vector.load %arg5[%c0_39, %c0_40] : memref<32x128xbf16, #tpu.memory_space<vmem>>, vector<32x128xbf16>
    %cst_41 = arith.constant dense<0.000000e+00> : vector<128x128xf32>
    %76 = tpu.matmul %74, %75, %cst_41 {dimension_numbers = #tpu.dot_dimension_numbers<[1], [0], [0], [1], [0, 0, 1, 1], [], []>} : vector<128x32xbf16>, vector<32x128xbf16>, vector<128x128xf32> -> vector<128x128xf32>
    %c0_42 = arith.constant 0 : index
    %c0_43 = arith.constant 0 : index
    %77 = vector.load %arg6[%c0_42, %c0_43] : memref<1x128xf32, #tpu.memory_space<vmem>>, vector<1x128xf32>
    %78 = vector.broadcast %77 : vector<1x128xf32> to vector<128x128xf32>
    %79 = arith.addf %76, %78 : vector<128x128xf32>
    %c0_44 = arith.constant 0 : index
    %c0_45 = arith.constant 0 : index
    %c0_46 = arith.constant 0 : index
    %80 = vector.load %arg7[%c0_44, %c0_45, %c0_46] : memref<1x128x128xf32, #tpu.memory_space<vmem>>, vector<1x128x128xf32>
    %81 = vector.shape_cast %80 : vector<1x128x128xf32> to vector<128x128xf32>
    %82 = vector.shape_cast %79 : vector<128x128xf32> to vector<1x128x128xf32>
    tpu.vector_store %arg7[%c0_44, %c0_45, %c0_46], %82 {strides = array<i32>} : memref<1x128x128xf32, #tpu.memory_space<vmem>>, vector<1x128x128xf32>,
    return
  }
  func.func @transform_0(%arg0: i32, %arg1: i32) -> (i32, i32, i32, i32) {
    %c0_i32 = arith.constant 0 : i32
    %c0_i32_0 = arith.constant 0 : i32
    %c0_i32_1 = arith.constant 0 : i32
    %c0_i32_2 = arith.constant 0 : i32
    return %arg0, %c0_i32, %c0_i32_0, %c0_i32_1 : i32, i32, i32, i32
  }
  func.func @transform_1(%arg0: i32, %arg1: i32) -> (i32, i32, i32) {
    %c0_i32 = arith.constant 0 : i32
    %c0_i32_0 = arith.constant 0 : i32
    %c0_i32_1 = arith.constant 0 : i32
    %c0_i32_2 = arith.constant 0 : i32
    return %c0_i32, %c0_i32_0, %c0_i32_1 : i32, i32, i32
  }
  func.func @transform_2(%arg0: i32, %arg1: i32) -> (i32, i32) {
    %c0_i32 = arith.constant 0 : i32
    %c0_i32_0 = arith.constant 0 : i32
    %c0_i32_1 = arith.constant 0 : i32
    return %c0_i32, %c0_i32_0 : i32, i32
  }
  func.func @transform_3(%arg0: i32, %arg1: i32) -> (i32, i32) {
    %c0_i32 = arith.constant 0 : i32
    %c0_i32_0 = arith.constant 0 : i32
    %c0_i32_1 = arith.constant 0 : i32
    return %c0_i32, %c0_i32_0 : i32, i32
  }
  func.func @transform_4(%arg0: i32, %arg1: i32) -> (i32, i32) {
    %c0_i32 = arith.constant 0 : i32
    %c0_i32_0 = arith.constant 0 : i32
    %c0_i32_1 = arith.constant 0 : i32
    return %c0_i32, %c0_i32_0 : i32, i32
  }
  func.func @transform_5(%arg0: i32, %arg1: i32) -> (i32, i32, i32) {
    %c0_i32 = arith.constant 0 : i32
    %c0_i32_0 = arith.constant 0 : i32
    return %arg0, %arg1, %c0_i32 : i32, i32, i32
  }
}

</mosaic_0001>

<llo_original>
// kernel: tpu_custom_call.1
$region0: #{tpu_custom_call.1}
  #allocation0 [shape = 'u32[]', space=smem, size = 0x4, offset = 0x4, fixed_abs, tag = 'smem constant byte address 0x4 - core index']
  #allocation1 [shape = 'u32[144,128]{1,0:T(1,128)}', space=vmem, size = 0x12000, scoped, tag = 'internal scratch']
  %s0 = inlined_call_operand.vmem [shape: bf16[2,18,18,32], index: 0, kind: input, shape index: {}]
  %s1 = inlined_call_operand.vmem [shape: bf16[9,32,32], index: 1, kind: input, shape index: {}]
  %s2 = inlined_call_operand.vmem [shape: f32[1,32], index: 2, kind: input, shape index: {}]
  %s3 = inlined_call_operand.vmem [shape: bf16[32,128], index: 3, kind: input, shape index: {}]
  %s4 = inlined_call_operand.vmem [shape: f32[1,128], index: 4, kind: input, shape index: {}]
  %s5 = inlined_call_operand.hbm [shape: f32[2,256,128], index: 5, kind: output, shape index: {}]
  %s6 = sld [smem:[#allocation0]]
  $region53: #{tpu_custom_call.1} parent=0
    _
  %s8 = ssub.s32 1, %s6
  %s9 = scalar_select 0, %s8, %s6
  $region1: #{tpu_custom_call.1} parent=0
    #allocation2 [shape = 'u8[131072]{0}', space=vmem, size = 0x20000, scoped, tag = 'output window, operand 0']
    #allocation3 [shape = 's32[2]{0}', space=sflag, size = 0x8, scoped, tag = 'scoped memory for tpu_custom_call.1']
    %10 = vsyncpa [#allocation3], 0
    %s11 = scalar_lea.sflag [#allocation3], 1
    %12 = vsyncpa %s11, 0
    loop: start=0, step=1, limit=6
    $region2: #{tpu_custom_call.1} parent=1 // loop_pre_header
      _
    $region3: #{tpu_custom_call.1} parent=1 // loop_header
      %s14 = sphi 0, %s18
      %p15 = scmp.ge.s32.totalorder %s14, 6
      %s21 = sphi 0, %s33
      %s22 = sphi 0, %s29
      %s23 = sphi 0, %s21
      %s24 = sphi 0, %s22
      %s25 = sphi 0, %s23
      %s26 = sphi 0, %s24
      %s36 = sphi 0, %s38
      %s39 = sphi 0, %s36
      %s40 = sphi 0, %s39
      %s56 = sphi 0, %s40
      %s60 = sphi 0, %s60
      %s62 = sphi 0, %s60
      %s63 = sphi 0, %s62
      %s77 = sphi 0, %s63
      %s81 = sphi 0, %s81
      %s83 = sphi 0, %s81
      %s84 = sphi 0, %s83
      %s98 = sphi 0, %s84
      %s102 = sphi 0, %s102
      %s104 = sphi 0, %s102
      %s105 = sphi 0, %s104
      %s119 = sphi 0, %s105
      %s123 = sphi 0, %s123
      %s125 = sphi 0, %s123
      %s126 = sphi 0, %s125
      %s140 = sphi 0, %s126
      %s148 = sphi 0, %s150
      %s151 = sphi 0, %s148
      %s152 = sphi 0, %s151
      %s168 = sphi 0, %s152
    $region4: #{tpu_custom_call.1} parent=1 // loop_header_branch
      %17 = sbr.rel (%p15) target = $region8
    $region5: #{tpu_custom_call.1} parent=1 // loop_body
      %s19 = ssub.s32 %s14, 1
      %s20 = ssub.s32 %s14, 2
      %s27 = sadd.s32 1, %s22
      %p28 = scmp.ge.s32.totalorder %s27, 2
      %s29 = scalar_select %p28, 0, %s27
      %s30 = sadd.s32 1, %s21
      %s31 = scalar_select %p28, %s30, %s21
      %p32 = scmp.ge.s32.totalorder %s31, 2
      %s33 = scalar_select %p32, 0, %s31
      %s34 = ssub.s32 %s21, %s33
      %p35 = scmp.eq.s32.totalorder %s34, 0
      %s37 = sadd.s32 %s36, 1
      %s38 = scalar_select %p35, %s36, %s37
      %p41 = pneg %p35
      %p42 = scmp.eq.s32.totalorder %s14, 3
      %p43 = por %p41, %p42
      %p44 = scmp.ne.s32.totalorder %s36, %s39
      %p45 = scmp.eq.s32.totalorder %s14, 0
      %p46 = por %p44, %p45
      %p47 = scmp.ne.s32.totalorder %s36, %s39
      %p48 = scmp.eq.s32.totalorder %s19, 3
      %p49 = por %p47, %p48
      %p50 = scmp.ne.s32.totalorder %s39, %s40
      %p51 = scmp.eq.s32.totalorder %s19, 0
      %p52 = por %p50, %p51
      %p53 = scmp.ne.s32.totalorder %s39, %s40
      %p54 = scmp.eq.s32.totalorder %s20, 3
      %p55 = por %p53, %p54
      %p57 = scmp.ne.s32.totalorder %s40, %s56
      %p58 = scmp.eq.s32.totalorder %s20, 0
      %p59 = por %p57, %p58
      %s61 = sadd.s32 %s60, 1
      %p64 = scmp.eq.s32.totalorder %s14, 3
      %p65 = scmp.ne.s32.totalorder %s60, %s62
      %p66 = scmp.eq.s32.totalorder %s14, 0
      %p67 = por %p65, %p66
      %p68 = scmp.ne.s32.totalorder %s60, %s62
      %p69 = scmp.eq.s32.totalorder %s19, 3
      %p70 = por %p68, %p69
      %p71 = scmp.ne.s32.totalorder %s62, %s63
      %p72 = scmp.eq.s32.totalorder %s19, 0
      %p73 = por %p71, %p72
      %p74 = scmp.ne.s32.totalorder %s62, %s63
      %p75 = scmp.eq.s32.totalorder %s20, 3
      %p76 = por %p74, %p75
      %p78 = scmp.ne.s32.totalorder %s63, %s77
      %p79 = scmp.eq.s32.totalorder %s20, 0
      %p80 = por %p78, %p79
      %s82 = sadd.s32 %s81, 1
      %p85 = scmp.eq.s32.totalorder %s14, 3
      %p86 = scmp.ne.s32.totalorder %s81, %s83
      %p87 = scmp.eq.s32.totalorder %s14, 0
      %p88 = por %p86, %p87
      %p89 = scmp.ne.s32.totalorder %s81, %s83
      %p90 = scmp.eq.s32.totalorder %s19, 3
      %p91 = por %p89, %p90
      %p92 = scmp.ne.s32.totalorder %s83, %s84
      %p93 = scmp.eq.s32.totalorder %s19, 0
      %p94 = por %p92, %p93
      %p95 = scmp.ne.s32.totalorder %s83, %s84
      %p96 = scmp.eq.s32.totalorder %s20, 3
      %p97 = por %p95, %p96
      %p99 = scmp.ne.s32.totalorder %s84, %s98
      %p100 = scmp.eq.s32.totalorder %s20, 0
      %p101 = por %p99, %p100
      %s103 = sadd.s32 %s102, 1
      %p106 = scmp.eq.s32.totalorder %s14, 3
      %p107 = scmp.ne.s32.totalorder %s102, %s104
      %p108 = scmp.eq.s32.totalorder %s14, 0
      %p109 = por %p107, %p108
      %p110 = scmp.ne.s32.totalorder %s102, %s104
      %p111 = scmp.eq.s32.totalorder %s19, 3
      %p112 = por %p110, %p111
      %p113 = scmp.ne.s32.totalorder %s104, %s105
      %p114 = scmp.eq.s32.totalorder %s19, 0
      %p115 = por %p113, %p114
      %p116 = scmp.ne.s32.totalorder %s104, %s105
      %p117 = scmp.eq.s32.totalorder %s20, 3
      %p118 = por %p116, %p117
      %p120 = scmp.ne.s32.totalorder %s105, %s119
      %p121 = scmp.eq.s32.totalorder %s20, 0
      %p122 = por %p120, %p121
      %s124 = sadd.s32 %s123, 1
      %p127 = scmp.eq.s32.totalorder %s14, 3
      %p128 = scmp.ne.s32.totalorder %s123, %s125
      %p129 = scmp.eq.s32.totalorder %s14, 0
      %p130 = por %p128, %p129
      %p131 = scmp.ne.s32.totalorder %s123, %s125
      %p132 = scmp.eq.s32.totalorder %s19, 3
      %p133 = por %p131, %p132
      %p134 = scmp.ne.s32.totalorder %s125, %s126
      %p135 = scmp.eq.s32.totalorder %s19, 0
      %p136 = por %p134, %p135
      %p137 = scmp.ne.s32.totalorder %s125, %s126
      %p138 = scmp.eq.s32.totalorder %s20, 3
      %p139 = por %p137, %p138
      %p141 = scmp.ne.s32.totalorder %s126, %s140
      %p142 = scmp.eq.s32.totalorder %s20, 0
      %p143 = por %p141, %p142
      %s144 = ssub.s32 %s21, %s33
      %s145 = ssub.s32 %s22, %s29
      %s146 = sor.u32 %s144, %s145
      %p147 = scmp.eq.s32.totalorder %s146, 0
      %s149 = sadd.s32 %s148, 1
      %s150 = scalar_select %p147, %s148, %s149
      %p153 = pneg %p147
      %p154 = scmp.eq.s32.totalorder %s14, 3
      %p155 = por %p153, %p154
      %p156 = scmp.ne.s32.totalorder %s148, %s151
      %p157 = scmp.eq.s32.totalorder %s14, 0
      %p158 = por %p156, %p157
      %p159 = scmp.ne.s32.totalorder %s148, %s151
      %p160 = scmp.eq.s32.totalorder %s19, 3
      %p161 = por %p159, %p160
      %p162 = scmp.ne.s32.totalorder %s151, %s152
      %p163 = scmp.eq.s32.totalorder %s19, 0
      %p164 = por %p162, %p163
      %p165 = scmp.ne.s32.totalorder %s151, %s152
      %p166 = scmp.eq.s32.totalorder %s20, 3
      %p167 = por %p165, %p166
      %p169 = scmp.ne.s32.totalorder %s152, %s168
      %p170 = scmp.eq.s32.totalorder %s20, 0
      %p171 = por %p169, %p170
      %p172 = scmp.le.s32.totalorder 1, %s14
      %p173 = scmp.lt.s32.totalorder %s14, 5
      %p174 = pnand %p172, %p173
      %p175 = pneg %p174
      // Predicated region
      $region9: #{tpu_custom_call.1} parent=5 // pred_check
        _
      $region10: #{tpu_custom_call.1} parent=5 // pred_check_branch
        %177 = sbr.rel (%p174) target = $region12
      $region11: #{tpu_custom_call.1} parent=5 // pred_region
        %s178 = ssub.s32 %s14, 1
        // Predicated region
        $region13: #{tpu_custom_call.1} parent=11 // pred_check
          %p179 = pneg %p73
        $region14: #{tpu_custom_call.1} parent=11 // pred_check_branch
          %181 = sbr.rel (%p179) target = $region16
        $region15: #{tpu_custom_call.1} parent=11 // pred_region
          _
        $region16: #{tpu_custom_call.1} parent=11 // pred_fallthru
          _
        // Predicated region
        $region17: #{tpu_custom_call.1} parent=11 // pred_check
          %p182 = pneg %p94
        $region18: #{tpu_custom_call.1} parent=11 // pred_check_branch
          %184 = sbr.rel (%p182) target = $region20
        $region19: #{tpu_custom_call.1} parent=11 // pred_region
          _
        $region20: #{tpu_custom_call.1} parent=11 // pred_fallthru
          _
        // Predicated region
        $region21: #{tpu_custom_call.1} parent=11 // pred_check
          %p185 = pneg %p115
        $region22: #{tpu_custom_call.1} parent=11 // pred_check_branch
          %187 = sbr.rel (%p185) target = $region24
        $region23: #{tpu_custom_call.1} parent=11 // pred_region
          _
        $region24: #{tpu_custom_call.1} parent=11 // pred_fallthru
          _
        // Predicated region
        $region25: #{tpu_custom_call.1} parent=11 // pred_check
          %p188 = pneg %p136
        $region26: #{tpu_custom_call.1} parent=11 // pred_check_branch
          %190 = sbr.rel (%p188) target = $region28
        $region27: #{tpu_custom_call.1} parent=11 // pred_region
          _
        $region28: #{tpu_custom_call.1} parent=11 // pred_fallthru
          _
      $region12: #{tpu_custom_call.1} parent=5 // pred_fallthru
        _
      %p191 = scmp.lt.s32.totalorder %s14, 4
      // Predicated region
      $region29: #{tpu_custom_call.1} parent=5 // pred_check
        %p192 = pneg %p191
      $region30: #{tpu_custom_call.1} parent=5 // pred_check_branch
        %194 = sbr.rel (%p192) target = $region32
      $region31: #{tpu_custom_call.1} parent=5 // pred_region
        // Predicated region
        $region33: #{tpu_custom_call.1} parent=31 // pred_check
          %p195 = pneg %p46
        $region34: #{tpu_custom_call.1} parent=31 // pred_check_branch
          %197 = sbr.rel (%p195) target = $region36
        $region35: #{tpu_custom_call.1} parent=31 // pred_region
          %p198 = scmp.lt.s32.totalorder %s21, 1
          %s199 = scalar_select %p198, %s21, 1
          %s200 = smul.addr %s199, 54
          %s201 = smul.addr %s200, 4
          %s202 = scalar_lea.vmem %s0, %s201
        $region36: #{tpu_custom_call.1} parent=31 // pred_fallthru
          _
      $region32: #{tpu_custom_call.1} parent=5 // pred_fallthru
        _
      %p203 = scmp.le.s32.totalorder 1, %s14
      %p204 = scmp.lt.s32.totalorder %s14, 5
      %p205 = pnand %p203, %p204
      %p206 = pneg %p205
      // Predicated region
      $region37: #{tpu_custom_call.1} parent=5 // pred_check
        _
      $region38: #{tpu_custom_call.1} parent=5 // pred_check_branch
        %208 = sbr.rel (%p205) target = $region40
      $region39: #{tpu_custom_call.1} parent=5 // pred_region
        %s209 = ssub.s32 %s14, 1
        %p210 = scmp.lt.s32.totalorder %s23, 1
        %s211 = scalar_select %p210, %s23, 1
        %s212 = smul.addr %s211, 54
        %s213 = smul.addr %s212, 4
        %s214 = scalar_lea.vmem %s0, %s213
        %p215 = pneg %p52
        %p216 = pneg %p49
        %p217 = pneg %p73
        %p218 = pneg %p70
        %p219 = pneg %p94
        %p220 = pneg %p91
        %p221 = pneg %p115
        %p222 = pneg %p112
        %p223 = pneg %p136
        %p224 = pneg %p133
        %p225 = pneg %p164
        %p226 = pneg %p161
        %s227 = sand.u32 %s151, 1
        %s228 = scalar_lea.sflag [#allocation3], %s227
        %s229 = sand.u32 %s151, 1
        %s230 = smul.addr %s229, 128
        %s231 = scalar_lea.vmem [#allocation2], %s230
        %p232 = scmp.lt.s32.totalorder %s23, 1
        %s233 = scalar_select %p232, %s23, 1
        %s234 = smul.addr %s233, 54
        %s235 = smul.addr %s234, 4
        %s236 = scalar_lea.vmem %s0, %s235
        %s237 = smul.u32 16, %s24
        %s239 = smul.u32 %s24, 8
        %s240 = smul.u32 %s239, 3
        %s241 = smul.addr %s240, 4
        %s242 = scalar_lea.vmem %s236, %s241
        %v243 = vld [vmem:[%s242] sm:$0xf]
        %v244 = vld [vmem:[%s242 + $0x4] sm:$0xf]
        %v245 = vld [vmem:[%s242 + $0x8] sm:$0x1]
        %v246 = vld [vmem:[%s242 + $0xc] sm:$0xf]
        %v247 = vld [vmem:[%s242 + $0x10] sm:$0xf]
        %v248 = vld [vmem:[%s242 + $0x14] sm:$0x1]
        %v249 = vld [vmem:[%s242 + $0x18] sm:$0xf]
        %v250 = vld [vmem:[%s242 + $0x1c] sm:$0xf]
        %v251 = vld [vmem:[%s242 + $0x20] sm:$0x1]
        %v252 = vld [vmem:[%s242 + $0x24] sm:$0xf]
        %v253 = vld [vmem:[%s242 + $0x28] sm:$0xf]
        %v254 = vld [vmem:[%s242 + $0x2c] sm:$0x1]
        %v255 = vld [vmem:[%s242 + $0x30] sm:$0xf]
        %v256 = vld [vmem:[%s242 + $0x34] sm:$0xf]
        %v257 = vld [vmem:[%s242 + $0x38] sm:$0x1]
        %v258 = vld [vmem:[%s242 + $0x3c] sm:$0xf]
        %v259 = vld [vmem:[%s242 + $0x40] sm:$0xf]
        %v260 = vld [vmem:[%s242 + $0x44] sm:$0x1]
        %v261 = vld [vmem:[%s242 + $0x48] sm:$0xf]
        %v262 = vld [vmem:[%s242 + $0x4c] sm:$0xf]
        %v263 = vld [vmem:[%s242 + $0x50] sm:$0x1]
        %v264 = vld [vmem:[%s242 + $0x54] sm:$0xf]
        %v265 = vld [vmem:[%s242 + $0x58] sm:$0xf]
        %v266 = vld [vmem:[%s242 + $0x5c] sm:$0x1]
        %v267 = vld [vmem:[%s1] sm:$0xf]
        %v268 = vld [vmem:[%s1 + $0x4] sm:$0xf]
        %v269 = vld [vmem:[%s1 + $0x8] sm:$0xf]
        %v270 = vld [vmem:[%s1 + $0xc] sm:$0xf]
        %vm271 = vsmask.f32 3328
        %vm272 = vsmask.f32 7440
        %vm273 = vmor %vm271, %vm272
        %v275 = vshrl.u32 %v243, 16
        %v277 = vrot.slane %v275, 4
        %v278 = vshll.u32 %v243, 16
        %v280 = vrot.slane %v278, 5
        %v281 = vor.u32 %v277, %v280
        %v282 = vrot.slane %v281, 4
        %v284 = vshll.u32 %v244, 16
        %v286 = vrot.slane %v284, 5
        %v287 = vsel %vm273, %v282, %v286
        %v288 = vshrl.u32 %v244, 16
        %v290 = vrot.slane %v288, 4
        %v291 = vor.u32 %v290, %v286
        %v292 = vrot.slane %v291, 4
        %v294 = vshll.u32 %v245, 16
        %v296 = vrot.slane %v294, 5
        %v297 = vsel %vm273, %v292, %v296
        %v299 = vshrl.u32 %v246, 16
        %v301 = vrot.slane %v299, 4
        %v302 = vshll.u32 %v246, 16
        %v304 = vrot.slane %v302, 5
        %v305 = vor.u32 %v301, %v304
        %v306 = vrot.slane %v305, 4
        %v308 = vshll.u32 %v247, 16
        %v310 = vrot.slane %v308, 5
        %v311 = vsel %vm273, %v306, %v310
        %v312 = vshrl.u32 %v247, 16
        %v314 = vrot.slane %v312, 4
        %v315 = vor.u32 %v314, %v310
        %v316 = vrot.slane %v315, 4
        %v318 = vshll.u32 %v248, 16
        %v320 = vrot.slane %v318, 5
        %v321 = vsel %vm273, %v316, %v320
        %v323 = vshrl.u32 %v249, 16
        %v325 = vrot.slane %v323, 4
        %v326 = vshll.u32 %v249, 16
        %v328 = vrot.slane %v326, 5
        %v329 = vor.u32 %v325, %v328
        %v330 = vrot.slane %v329, 4
        %v332 = vshll.u32 %v250, 16
        %v334 = vrot.slane %v332, 5
        %v335 = vsel %vm273, %v330, %v334
        %v336 = vshrl.u32 %v250, 16
        %v338 = vrot.slane %v336, 4
        %v339 = vor.u32 %v338, %v334
        %v340 = vrot.slane %v339, 4
        %v342 = vshll.u32 %v251, 16
        %v344 = vrot.slane %v342, 5
        %v345 = vsel %vm273, %v340, %v344
        %v347 = vshrl.u32 %v252, 16
        %v349 = vrot.slane %v347, 4
        %v350 = vshll.u32 %v252, 16
        %v352 = vrot.slane %v350, 5
        %v353 = vor.u32 %v349, %v352
        %v354 = vrot.slane %v353, 4
        %v356 = vshll.u32 %v253, 16
        %v358 = vrot.slane %v356, 5
        %v359 = vsel %vm273, %v354, %v358
        %v360 = vshrl.u32 %v253, 16
        %v362 = vrot.slane %v360, 4
        %v363 = vor.u32 %v362, %v358
        %v364 = vrot.slane %v363, 4
        %v366 = vshll.u32 %v254, 16
        %v368 = vrot.slane %v366, 5
        %v369 = vsel %vm273, %v364, %v368
        %v371 = vshrl.u32 %v255, 16
        %v373 = vrot.slane %v371, 4
        %v374 = vshll.u32 %v255, 16
        %v376 = vrot.slane %v374, 5
        %v377 = vor.u32 %v373, %v376
        %v378 = vrot.slane %v377, 4
        %v380 = vshll.u32 %v256, 16
        %v382 = vrot.slane %v380, 5
        %v383 = vsel %vm273, %v378, %v382
        %v384 = vshrl.u32 %v256, 16
        %v386 = vrot.slane %v384, 4
        %v387 = vor.u32 %v386, %v382
        %v388 = vrot.slane %v387, 4
        %v390 = vshll.u32 %v257, 16
        %v392 = vrot.slane %v390, 5
        %v393 = vsel %vm273, %v388, %v392
        %v395 = vshrl.u32 %v258, 16
        %v397 = vrot.slane %v395, 4
        %v398 = vshll.u32 %v258, 16
        %v400 = vrot.slane %v398, 5
        %v401 = vor.u32 %v397, %v400
        %v402 = vrot.slane %v401, 4
        %v404 = vshll.u32 %v259, 16
        %v406 = vrot.slane %v404, 5
        %v407 = vsel %vm273, %v402, %v406
        %v408 = vshrl.u32 %v259, 16
        %v410 = vrot.slane %v408, 4
        %v411 = vor.u32 %v410, %v406
        %v412 = vrot.slane %v411, 4
        %v414 = vshll.u32 %v260, 16
        %v416 = vrot.slane %v414, 5
        %v417 = vsel %vm273, %v412, %v416
        %v419 = vshrl.u32 %v261, 16
        %v421 = vrot.slane %v419, 4
        %v422 = vshll.u32 %v261, 16
        %v424 = vrot.slane %v422, 5
        %v425 = vor.u32 %v421, %v424
        %v426 = vrot.slane %v425, 4
        %v428 = vshll.u32 %v262, 16
        %v430 = vrot.slane %v428, 5
        %v431 = vsel %vm273, %v426, %v430
        %v432 = vshrl.u32 %v262, 16
        %v434 = vrot.slane %v432, 4
        %v435 = vor.u32 %v434, %v430
        %v436 = vrot.slane %v435, 4
        %v438 = vshll.u32 %v263, 16
        %v440 = vrot.slane %v438, 5
        %v441 = vsel %vm273, %v436, %v440
        %v443 = vshrl.u32 %v264, 16
        %v445 = vrot.slane %v443, 4
        %v446 = vshll.u32 %v264, 16
        %v448 = vrot.slane %v446, 5
        %v449 = vor.u32 %v445, %v448
        %v450 = vrot.slane %v449, 4
        %v452 = vshll.u32 %v265, 16
        %v454 = vrot.slane %v452, 5
        %v455 = vsel %vm273, %v450, %v454
        %v456 = vshrl.u32 %v265, 16
        %v458 = vrot.slane %v456, 4
        %v459 = vor.u32 %v458, %v454
        %v460 = vrot.slane %v459, 4
        %v462 = vshll.u32 %v266, 16
        %v464 = vrot.slane %v462, 5
        %v465 = vsel %vm273, %v460, %v464
        %s466 = scalar_lea.vmem %s1, 16
        %v467 = vld [vmem:[%s466] sm:$0xf]
        %v468 = vld [vmem:[%s466 + $0x4] sm:$0xf]
        %v469 = vld [vmem:[%s466 + $0x8] sm:$0xf]
        %v470 = vld [vmem:[%s466 + $0xc] sm:$0xf]
        %v471 = vunpack.c.l.b16 %v287
        %v472 = vunpack.c.l.b16 %v297
        %v473 = vunpack.c.l.b16 %v311
        %v474 = vunpack.c.l.b16 %v321
        %v475 = vunpack.c.l.b16 %v335
        %v476 = vunpack.c.l.b16 %v345
        %v477 = vunpack.c.l.b16 %v359
        %v478 = vunpack.c.l.b16 %v369
        %v479 = vunpack.c.l.b16 %v383
        %v480 = vunpack.c.l.b16 %v393
        %v481 = vunpack.c.l.b16 %v407
        %v482 = vunpack.c.l.b16 %v417
        %v483 = vunpack.c.l.b16 %v431
        %v484 = vunpack.c.l.b16 %v441
        %v485 = vunpack.c.l.b16 %v455
        %v486 = vunpack.c.l.b16 %v465
        %v487 = vpack.c.b16 %v472, %v471
        %v488 = vpack.c.b16 %v474, %v473
        %v489 = vpack.c.b16 %v476, %v475
        %v490 = vpack.c.b16 %v478, %v477
        %v491 = vpack.c.b16 %v480, %v479
        %v492 = vpack.c.b16 %v482, %v481
        %v493 = vpack.c.b16 %v484, %v483
        %v494 = vpack.c.b16 %v486, %v485
        %v499 = vunpack.c.l.b16 %v467
        %v500 = vunpack.c.l.b16 %v468
        %v501 = vunpack.c.l.b16 %v469
        %v502 = vunpack.c.l.b16 %v470
        %v503 = vpack.c.b16 %v500, %v499
        %v504 = vpack.c.b16 %v502, %v501
        %vm507 = vcmask 261120
        %v509 = vsel %vm507, %v487, 0
        %v512 = vsel %vm507, %v488, 0
        %v515 = vsel %vm507, %v489, 0
        %v518 = vsel %vm507, %v490, 0
        %v521 = vsel %vm507, %v491, 0
        %v524 = vsel %vm507, %v492, 0
        %v527 = vsel %vm507, %v493, 0
        %v530 = vsel %vm507, %v494, 0
        %532 = vmatprep.subr.bf16.mxu0 0
        %533 = vmatpush1.bf16.msra.mxu0 %v503
        %534 = vmatprep.subr.bf16.mxu0 0
        %535 = vmatpush1.bf16.msra.mxu0 %v504
        %536 = vmatprep.subr.bf16.mxu0 0
        %537 = vmatpush1.bf16.msra.mxu0 0
        %538 = vmatprep.subr.bf16.mxu0 0
        %539 = vmatpush1.bf16.msra.mxu0 0
        %540 = vmatprep.subr.bf16.mxu0 0
        %541 = vmatpush1.bf16.msra.mxu0 0
        %542 = vmatprep.subr.bf16.mxu0 0
        %543 = vmatpush1.bf16.msra.mxu0 0
        %544 = vmatprep.subr.bf16.mxu0 0
        %545 = vmatpush1.bf16.msra.mxu0 0
        %546 = vmatprep.subr.bf16.mxu0 0
        %547 = vmatpush1.bf16.msra.mxu0 0
        %548 = vmatprep.subr.bf16.mxu0 0
        %549 = vmatpush1.bf16.msra.mxu0 0
        %550 = vmatprep.subr.bf16.mxu0 0
        %551 = vmatpush1.bf16.msra.mxu0 0
        %552 = vmatprep.subr.bf16.mxu0 0
        %553 = vmatpush1.bf16.msra.mxu0 0
        %554 = vmatprep.subr.bf16.mxu0 0
        %555 = vmatpush1.bf16.msra.mxu0 0
        %556 = vmatprep.subr.bf16.mxu0 0
        %557 = vmatpush1.bf16.msra.mxu0 0
        %558 = vmatprep.subr.bf16.mxu0 0
        %559 = vmatpush1.bf16.msra.mxu0 0
        %560 = vmatprep.subr.bf16.mxu0 0
        %561 = vmatpush1.bf16.msra.mxu0 0
        %562 = vmatprep.subr.bf16.mxu0 0
        %563 = vmatpush1.bf16.msra.mxu0 0
        %564 = vmatprep.mubr.bf16.mxu0 0
        %565 = vmatmul.mubr.bf16.gmra.mrb[0].mxu0 %v509
        %v566 = vpop.f32.mrb[0].mxu0
        %v567 = vadd.f32 0.0, %v566
        %v568 = vpop.f32.mrb[0].mxu0
        %v569 = vpop.f32.mrb[0].mxu0
        %v570 = vadd.f32 0.0, %v569
        %v571 = vpop.f32.mrb[0].mxu0
        %572 = vmatprep.mubr.bf16.mxu0 0
        %573 = vmatmul.mubr.bf16.gmra.mrb[0].mxu0 %v512
        %v574 = vpop.f32.mrb[0].mxu0
        %v575 = vadd.f32 0.0, %v574
        %v576 = vpop.f32.mrb[0].mxu0
        %v577 = vpop.f32.mrb[0].mxu0
        %v578 = vadd.f32 0.0, %v577
        %v579 = vpop.f32.mrb[0].mxu0
        %580 = vmatprep.mubr.bf16.mxu0 0
        %581 = vmatmul.mubr.bf16.gmra.mrb[0].mxu0 %v515
        %v582 = vpop.f32.mrb[0].mxu0
        %v583 = vadd.f32 0.0, %v582
        %v584 = vpop.f32.mrb[0].mxu0
        %v585 = vpop.f32.mrb[0].mxu0
        %v586 = vadd.f32 0.0, %v585
        %v587 = vpop.f32.mrb[0].mxu0
        %588 = vmatprep.mubr.bf16.mxu0 0
        %589 = vmatmul.mubr.bf16.gmra.mrb[0].mxu0 %v518
        %v590 = vpop.f32.mrb[0].mxu0
        %v591 = vadd.f32 0.0, %v590
        %v592 = vpop.f32.mrb[0].mxu0
        %v593 = vpop.f32.mrb[0].mxu0
        %v594 = vadd.f32 0.0, %v593
        %v595 = vpop.f32.mrb[0].mxu0
        %596 = vmatprep.mubr.bf16.mxu0 0
        %597 = vmatmul.mubr.bf16.gmra.mrb[0].mxu0 %v521
        %v598 = vpop.f32.mrb[0].mxu0
        %v599 = vadd.f32 0.0, %v598
        %v600 = vpop.f32.mrb[0].mxu0
        %v601 = vpop.f32.mrb[0].mxu0
        %v602 = vadd.f32 0.0, %v601
        %v603 = vpop.f32.mrb[0].mxu0
        %604 = vmatprep.mubr.bf16.mxu0 0
        %605 = vmatmul.mubr.bf16.gmra.mrb[0].mxu0 %v524
        %v606 = vpop.f32.mrb[0].mxu0
        %v607 = vadd.f32 0.0, %v606
        %v608 = vpop.f32.mrb[0].mxu0
        %v609 = vpop.f32.mrb[0].mxu0
        %v610 = vadd.f32 0.0, %v609
        %v611 = vpop.f32.mrb[0].mxu0
        %612 = vmatprep.mubr.bf16.mxu0 0
        %613 = vmatmul.mubr.bf16.gmra.mrb[0].mxu0 %v527
        %v614 = vpop.f32.mrb[0].mxu0
        %v615 = vadd.f32 0.0, %v614
        %v616 = vpop.f32.mrb[0].mxu0
        %v617 = vpop.f32.mrb[0].mxu0
        %v618 = vadd.f32 0.0, %v617
        %v619 = vpop.f32.mrb[0].mxu0
        %620 = vmatprep.mubr.bf16.mxu0 0
        %621 = vmatmul.mubr.bf16.gmra.mrb[0].mxu0 %v530
        %v622 = vpop.f32.mrb[0].mxu0
        %v623 = vadd.f32 0.0, %v622
        %v624 = vpop.f32.mrb[0].mxu0
        %v625 = vpop.f32.mrb[0].mxu0
        %v626 = vadd.f32 0.0, %v625
        %v627 = vpop.f32.mrb[0].mxu0
        %628 = vdwg.mxu0
        %v645 = vunpack.c.l.b16 %v243
        %v646 = vunpack.c.l.b16 %v244
        %v647 = vunpack.c.l.b16 %v246
        %v648 = vunpack.c.l.b16 %v247
        %v649 = vunpack.c.l.b16 %v249
        %v650 = vunpack.c.l.b16 %v250
        %v651 = vunpack.c.l.b16 %v252
        %v652 = vunpack.c.l.b16 %v253
        %v653 = vunpack.c.l.b16 %v255
        %v654 = vunpack.c.l.b16 %v256
        %v655 = vunpack.c.l.b16 %v258
        %v656 = vunpack.c.l.b16 %v259
        %v657 = vunpack.c.l.b16 %v261
        %v658 = vunpack.c.l.b16 %v262
        %v659 = vunpack.c.l.b16 %v264
        %v660 = vunpack.c.l.b16 %v265
        %v661 = vpack.c.b16 %v646, %v645
        %v662 = vpack.c.b16 %v648, %v647
        %v663 = vpack.c.b16 %v650, %v649
        %v664 = vpack.c.b16 %v652, %v651
        %v665 = vpack.c.b16 %v654, %v653
        %v666 = vpack.c.b16 %v656, %v655
        %v667 = vpack.c.b16 %v658, %v657
        %v668 = vpack.c.b16 %v660, %v659
        %v673 = vunpack.c.l.b16 %v267
        %v674 = vunpack.c.l.b16 %v268
        %v675 = vunpack.c.l.b16 %v269
        %v676 = vunpack.c.l.b16 %v270
        %v677 = vpack.c.b16 %v674, %v673
        %v678 = vpack.c.b16 %v676, %v675
        %v682 = vsel %vm507, %v661, 0
        %v685 = vsel %vm507, %v662, 0
        %v688 = vsel %vm507, %v663, 0
        %v691 = vsel %vm507, %v664, 0
        %v694 = vsel %vm507, %v665, 0
        %v697 = vsel %vm507, %v666, 0
        %v700 = vsel %vm507, %v667, 0
        %v703 = vsel %vm507, %v668, 0
        %705 = vmatprep.subr.bf16.mxu0 0
        %706 = vmatpush1.bf16.msra.mxu0 %v677
        %707 = vmatprep.subr.bf16.mxu0 0
        %708 = vmatpush1.bf16.msra.mxu0 %v678
        %709 = vmatprep.subr.bf16.mxu0 0
        %710 = vmatpush1.bf16.msra.mxu0 0
        %711 = vmatprep.subr.bf16.mxu0 0
        %712 = vmatpush1.bf16.msra.mxu0 0
        %713 = vmatprep.subr.bf16.mxu0 0
        %714 = vmatpush1.bf16.msra.mxu0 0
        %715 = vmatprep.subr.bf16.mxu0 0
        %716 = vmatpush1.bf16.msra.mxu0 0
        %717 = vmatprep.subr.bf16.mxu0 0
        %718 = vmatpush1.bf16.msra.mxu0 0
        %719 = vmatprep.subr.bf16.mxu0 0
        %720 = vmatpush1.bf16.msra.mxu0 0
        %721 = vmatprep.subr.bf16.mxu0 0
        %722 = vmatpush1.bf16.msra.mxu0 0
        %723 = vmatprep.subr.bf16.mxu0 0
        %724 = vmatpush1.bf16.msra.mxu0 0
        %725 = vmatprep.subr.bf16.mxu0 0
        %726 = vmatpush1.bf16.msra.mxu0 0
        %727 = vmatprep.subr.bf16.mxu0 0
        %728 = vmatpush1.bf16.msra.mxu0 0
        %729 = vmatprep.subr.bf16.mxu0 0
        %730 = vmatpush1.bf16.msra.mxu0 0
        %731 = vmatprep.subr.bf16.mxu0 0
        %732 = vmatpush1.bf16.msra.mxu0 0
        %733 = vmatprep.subr.bf16.mxu0 0
        %734 = vmatpush1.bf16.msra.mxu0 0
        %735 = vmatprep.subr.bf16.mxu0 0
        %736 = vmatpush1.bf16.msra.mxu0 0
        %737 = vmatprep.mubr.bf16.mxu0 0
        %738 = vmatmul.mubr.bf16.gmra.mrb[0].mxu0 %v682
        %v739 = vpop.f32.mrb[0].mxu0
        %v740 = vadd.f32 %v567, %v739
        %v741 = vpop.f32.mrb[0].mxu0
        %v742 = vpop.f32.mrb[0].mxu0
        %v743 = vadd.f32 %v570, %v742
        %v744 = vpop.f32.mrb[0].mxu0
        %745 = vmatprep.mubr.bf16.mxu0 0
        %746 = vmatmul.mubr.bf16.gmra.mrb[0].mxu0 %v685
        %v747 = vpop.f32.mrb[0].mxu0
        %v748 = vadd.f32 %v575, %v747
        %v749 = vpop.f32.mrb[0].mxu0
        %v750 = vpop.f32.mrb[0].mxu0
        %v751 = vadd.f32 %v578, %v750
        %v752 = vpop.f32.mrb[0].mxu0
        %753 = vmatprep.mubr.bf16.mxu0 0
        %754 = vmatmul.mubr.bf16.gmra.mrb[0].mxu0 %v688
        %v755 = vpop.f32.mrb[0].mxu0
        %v756 = vadd.f32 %v583, %v755
        %v757 = vpop.f32.mrb[0].mxu0
        %v758 = vpop.f32.mrb[0].mxu0
        %v759 = vadd.f32 %v586, %v758
        %v760 = vpop.f32.mrb[0].mxu0
        %761 = vmatprep.mubr.bf16.mxu0 0
        %762 = vmatmul.mubr.bf16.gmra.mrb[0].mxu0 %v691
        %v763 = vpop.f32.mrb[0].mxu0
        %v764 = vadd.f32 %v591, %v763
        %v765 = vpop.f32.mrb[0].mxu0
        %v766 = vpop.f32.mrb[0].mxu0
        %v767 = vadd.f32 %v594, %v766
        %v768 = vpop.f32.mrb[0].mxu0
        %769 = vmatprep.mubr.bf16.mxu0 0
        %770 = vmatmul.mubr.bf16.gmra.mrb[0].mxu0 %v694
        %v771 = vpop.f32.mrb[0].mxu0
        %v772 = vadd.f32 %v599, %v771
        %v773 = vpop.f32.mrb[0].mxu0
        %v774 = vpop.f32.mrb[0].mxu0
        %v775 = vadd.f32 %v602, %v774
        %v776 = vpop.f32.mrb[0].mxu0
        %777 = vmatprep.mubr.bf16.mxu0 0
        %778 = vmatmul.mubr.bf16.gmra.mrb[0].mxu0 %v697
        %v779 = vpop.f32.mrb[0].mxu0
        %v780 = vadd.f32 %v607, %v779
        %v781 = vpop.f32.mrb[0].mxu0
        %v782 = vpop.f32.mrb[0].mxu0
        %v783 = vadd.f32 %v610, %v782
        %v784 = vpop.f32.mrb[0].mxu0
        %785 = vmatprep.mubr.bf16.mxu0 0
        %786 = vmatmul.mubr.bf16.gmra.mrb[0].mxu0 %v700
        %v787 = vpop.f32.mrb[0].mxu0
        %v788 = vadd.f32 %v615, %v787
        %v789 = vpop.f32.mrb[0].mxu0
        %v790 = vpop.f32.mrb[0].mxu0
        %v791 = vadd.f32 %v618, %v790
        %v792 = vpop.f32.mrb[0].mxu0
        %793 = vmatprep.mubr.bf16.mxu0 0
        %794 = vmatmul.mubr.bf16.gmra.mrb[0].mxu0 %v703
        %v795 = vpop.f32.mrb[0].mxu0
        %v796 = vadd.f32 %v623, %v795
        %v797 = vpop.f32.mrb[0].mxu0
        %v798 = vpop.f32.mrb[0].mxu0
        %v799 = vadd.f32 %v626, %v798
        %v800 = vpop.f32.mrb[0].mxu0
        %801 = vdwg.mxu0
        %vm810 = vcmask 1042432
        %vm811 = vcmask 1046532
        %vm812 = vmor %vm810, %vm811
        %v813 = vrot.slane %v243, 5
        %v814 = vrot.slane %v813, 4
        %v815 = vrot.slane %v244, 5
        %v816 = vsel %vm812, %v814, %v815
        %v817 = vrot.slane %v815, 4
        %v818 = vrot.slane %v245, 5
        %v819 = vsel %vm812, %v817, %v818
        %v820 = vrot.slane %v246, 5
        %v821 = vrot.slane %v820, 4
        %v822 = vrot.slane %v247, 5
        %v823 = vsel %vm812, %v821, %v822
        %v824 = vrot.slane %v822, 4
        %v825 = vrot.slane %v248, 5
        %v826 = vsel %vm812, %v824, %v825
        %v827 = vrot.slane %v249, 5
        %v828 = vrot.slane %v827, 4
        %v829 = vrot.slane %v250, 5
        %v830 = vsel %vm812, %v828, %v829
        %v831 = vrot.slane %v829, 4
        %v832 = vrot.slane %v251, 5
        %v833 = vsel %vm812, %v831, %v832
        %v834 = vrot.slane %v252, 5
        %v835 = vrot.slane %v834, 4
        %v836 = vrot.slane %v253, 5
        %v837 = vsel %vm812, %v835, %v836
        %v838 = vrot.slane %v836, 4
        %v839 = vrot.slane %v254, 5
        %v840 = vsel %vm812, %v838, %v839
        %v841 = vrot.slane %v255, 5
        %v842 = vrot.slane %v841, 4
        %v843 = vrot.slane %v256, 5
        %v844 = vsel %vm812, %v842, %v843
        %v845 = vrot.slane %v843, 4
        %v846 = vrot.slane %v257, 5
        %v847 = vsel %vm812, %v845, %v846
        %v848 = vrot.slane %v258, 5
        %v849 = vrot.slane %v848, 4
        %v850 = vrot.slane %v259, 5
        %v851 = vsel %vm812, %v849, %v850
        %v852 = vrot.slane %v850, 4
        %v853 = vrot.slane %v260, 5
        %v854 = vsel %vm812, %v852, %v853
        %v855 = vrot.slane %v261, 5
        %v856 = vrot.slane %v855, 4
        %v857 = vrot.slane %v262, 5
        %v858 = vsel %vm812, %v856, %v857
        %v859 = vrot.slane %v857, 4
        %v860 = vrot.slane %v263, 5
        %v861 = vsel %vm812, %v859, %v860
        %v862 = vrot.slane %v264, 5
        %v863 = vrot.slane %v862, 4
        %v864 = vrot.slane %v265, 5
        %v865 = vsel %vm812, %v863, %v864
        %v866 = vrot.slane %v864, 4
        %v867 = vrot.slane %v266, 5
        %v868 = vsel %vm812, %v866, %v867
        %s869 = scalar_lea.vmem %s1, 32
        %v870 = vld [vmem:[%s869] sm:$0xf]
        %v871 = vld [vmem:[%s869 + $0x4] sm:$0xf]
        %v872 = vld [vmem:[%s869 + $0x8] sm:$0xf]
        %v873 = vld [vmem:[%s869 + $0xc] sm:$0xf]
        %v874 = vunpack.c.l.b16 %v816
        %v875 = vunpack.c.l.b16 %v819
        %v876 = vunpack.c.l.b16 %v823
        %v877 = vunpack.c.l.b16 %v826
        %v878 = vunpack.c.l.b16 %v830
        %v879 = vunpack.c.l.b16 %v833
        %v880 = vunpack.c.l.b16 %v837
        %v881 = vunpack.c.l.b16 %v840
        %v882 = vunpack.c.l.b16 %v844
        %v883 = vunpack.c.l.b16 %v847
        %v884 = vunpack.c.l.b16 %v851
        %v885 = vunpack.c.l.b16 %v854
        %v886 = vunpack.c.l.b16 %v858
        %v887 = vunpack.c.l.b16 %v861
        %v888 = vunpack.c.l.b16 %v865
        %v889 = vunpack.c.l.b16 %v868
        %v890 = vpack.c.b16 %v875, %v874
        %v891 = vpack.c.b16 %v877, %v876
        %v892 = vpack.c.b16 %v879, %v878
        %v893 = vpack.c.b16 %v881, %v880
        %v894 = vpack.c.b16 %v883, %v882
        %v895 = vpack.c.b16 %v885, %v884
        %v896 = vpack.c.b16 %v887, %v886
        %v897 = vpack.c.b16 %v889, %v888
        %v902 = vunpack.c.l.b16 %v870
        %v903 = vunpack.c.l.b16 %v871
        %v904 = vunpack.c.l.b16 %v872
        %v905 = vunpack.c.l.b16 %v873
        %v906 = vpack.c.b16 %v903, %v902
        %v907 = vpack.c.b16 %v905, %v904
        %v911 = vsel %vm507, %v890, 0
        %v914 = vsel %vm507, %v891, 0
        %v917 = vsel %vm507, %v892, 0
        %v920 = vsel %vm507, %v893, 0
        %v923 = vsel %vm507, %v894, 0
        %v926 = vsel %vm507, %v895, 0
        %v929 = vsel %vm507, %v896, 0
        %v932 = vsel %vm507, %v897, 0
        %934 = vmatprep.subr.bf16.mxu0 0
        %935 = vmatpush1.bf16.msra.mxu0 %v906
        %936 = vmatprep.subr.bf16.mxu0 0
        %937 = vmatpush1.bf16.msra.mxu0 %v907
        %938 = vmatprep.subr.bf16.mxu0 0
        %939 = vmatpush1.bf16.msra.mxu0 0
        %940 = vmatprep.subr.bf16.mxu0 0
        %941 = vmatpush1.bf16.msra.mxu0 0
        %942 = vmatprep.subr.bf16.mxu0 0
        %943 = vmatpush1.bf16.msra.mxu0 0
        %944 = vmatprep.subr.bf16.mxu0 0
        %945 = vmatpush1.bf16.msra.mxu0 0
        %946 = vmatprep.subr.bf16.mxu0 0
        %947 = vmatpush1.bf16.msra.mxu0 0
        %948 = vmatprep.subr.bf16.mxu0 0
        %949 = vmatpush1.bf16.msra.mxu0 0
        %950 = vmatprep.subr.bf16.mxu0 0
        %951 = vmatpush1.bf16.msra.mxu0 0
        %952 = vmatprep.subr.bf16.mxu0 0
        %953 = vmatpush1.bf16.msra.mxu0 0
        %954 = vmatprep.subr.bf16.mxu0 0
        %955 = vmatpush1.bf16.msra.mxu0 0
        %956 = vmatprep.subr.bf16.mxu0 0
        %957 = vmatpush1.bf16.msra.mxu0 0
        %958 = vmatprep.subr.bf16.mxu0 0
        %959 = vmatpush1.bf16.msra.mxu0 0
        %960 = vmatprep.subr.bf16.mxu0 0
        %961 = vmatpush1.bf16.msra.mxu0 0
        %962 = vmatprep.subr.bf16.mxu0 0
        %963 = vmatpush1.bf16.msra.mxu0 0
        %964 = vmatprep.subr.bf16.mxu0 0
        %965 = vmatpush1.bf16.msra.mxu0 0
        %966 = vmatprep.mubr.bf16.mxu0 0
        %967 = vmatmul.mubr.bf16.gmra.mrb[0].mxu0 %v911
        %v968 = vpop.f32.mrb[0].mxu0
        %v969 = vadd.f32 0.0, %v968
        %v970 = vpop.f32.mrb[0].mxu0
        %v971 = vpop.f32.mrb[0].mxu0
        %v972 = vadd.f32 0.0, %v971
        %v973 = vpop.f32.mrb[0].mxu0
        %974 = vmatprep.mubr.bf16.mxu0 0
        %975 = vmatmul.mubr.bf16.gmra.mrb[0].mxu0 %v914
        %v976 = vpop.f32.mrb[0].mxu0
        %v977 = vadd.f32 0.0, %v976
        %v978 = vpop.f32.mrb[0].mxu0
        %v979 = vpop.f32.mrb[0].mxu0
        %v980 = vadd.f32 0.0, %v979
        %v981 = vpop.f32.mrb[0].mxu0
        %982 = vmatprep.mubr.bf16.mxu0 0
        %983 = vmatmul.mubr.bf16.gmra.mrb[0].mxu0 %v917
        %v984 = vpop.f32.mrb[0].mxu0
        %v985 = vadd.f32 0.0, %v984
        %v986 = vpop.f32.mrb[0].mxu0
        %v987 = vpop.f32.mrb[0].mxu0
        %v988 = vadd.f32 0.0, %v987
        %v989 = vpop.f32.mrb[0].mxu0
        %990 = vmatprep.mubr.bf16.mxu0 0
        %991 = vmatmul.mubr.bf16.gmra.mrb[0].mxu0 %v920
        %v992 = vpop.f32.mrb[0].mxu0
        %v993 = vadd.f32 0.0, %v992
        %v994 = vpop.f32.mrb[0].mxu0
        %v995 = vpop.f32.mrb[0].mxu0
        %v996 = vadd.f32 0.0, %v995
        %v997 = vpop.f32.mrb[0].mxu0
        %998 = vmatprep.mubr.bf16.mxu0 0
        %999 = vmatmul.mubr.bf16.gmra.mrb[0].mxu0 %v923
        %v1000 = vpop.f32.mrb[0].mxu0
        %v1001 = vadd.f32 0.0, %v1000
        %v1002 = vpop.f32.mrb[0].mxu0
        %v1003 = vpop.f32.mrb[0].mxu0
        %v1004 = vadd.f32 0.0, %v1003
        %v1005 = vpop.f32.mrb[0].mxu0
        %1006 = vmatprep.mubr.bf16.mxu0 0
        %1007 = vmatmul.mubr.bf16.gmra.mrb[0].mxu0 %v926
        %v1008 = vpop.f32.mrb[0].mxu0
        %v1009 = vadd.f32 0.0, %v1008
        %v1010 = vpop.f32.mrb[0].mxu0
        %v1011 = vpop.f32.mrb[0].mxu0
        %v1012 = vadd.f32 0.0, %v1011
        %v1013 = vpop.f32.mrb[0].mxu0
        %1014 = vmatprep.mubr.bf16.mxu0 0
        %1015 = vmatmul.mubr.bf16.gmra.mrb[0].mxu0 %v929
        %v1016 = vpop.f32.mrb[0].mxu0
        %v1017 = vadd.f32 0.0, %v1016
        %v1018 = vpop.f32.mrb[0].mxu0
        %v1019 = vpop.f32.mrb[0].mxu0
        %v1020 = vadd.f32 0.0, %v1019
        %v1021 = vpop.f32.mrb[0].mxu0
        %1022 = vmatprep.mubr.bf16.mxu0 0
        %1023 = vmatmul.mubr.bf16.gmra.mrb[0].mxu0 %v932
        %v1024 = vpop.f32.mrb[0].mxu0
        %v1025 = vadd.f32 0.0, %v1024
        %v1026 = vpop.f32.mrb[0].mxu0
        %v1027 = vpop.f32.mrb[0].mxu0
        %v1028 = vadd.f32 0.0, %v1027
        %v1029 = vpop.f32.mrb[0].mxu0
        %1030 = vdwg.mxu0
        %v1031 = vadd.f32 %v740, %v969
        %v1032 = vadd.f32 %v743, %v972
        %v1033 = vadd.f32 %v748, %v977
        %v1034 = vadd.f32 %v751, %v980
        %v1035 = vadd.f32 %v756, %v985
        %v1036 = vadd.f32 %v759, %v988
        %v1037 = vadd.f32 %v764, %v993
        %v1038 = vadd.f32 %v767, %v996
        %v1039 = vadd.f32 %v772, %v1001
        %v1040 = vadd.f32 %v775, %v1004
        %v1041 = vadd.f32 %v780, %v1009
        %v1042 = vadd.f32 %v783, %v1012
        %v1043 = vadd.f32 %v788, %v1017
        %v1044 = vadd.f32 %v791, %v1020
        %v1045 = vadd.f32 %v796, %v1025
        %v1046 = vadd.f32 %v799, %v1028
        %s1047 = sadd.s32 %s239, 1
        %s1048 = smul.u32 %s1047, 3
        %s1049 = smul.addr %s1048, 4
        %s1050 = scalar_lea.vmem %s236, %s1049
        %v1051 = vld [vmem:[%s1050] sm:$0xf]
        %v1052 = vld [vmem:[%s1050 + $0x4] sm:$0xf]
        %v1053 = vld [vmem:[%s1050 + $0x8] sm:$0x1]
        %v1054 = vld [vmem:[%s1050 + $0xc] sm:$0xf]
        %v1055 = vld [vmem:[%s1050 + $0x10] sm:$0xf]
        %v1056 = vld [vmem:[%s1050 + $0x14] sm:$0x1]
        %v1057 = vld [vmem:[%s1050 + $0x18] sm:$0xf]
        %v1058 = vld [vmem:[%s1050 + $0x1c] sm:$0xf]
        %v1059 = vld [vmem:[%s1050 + $0x20] sm:$0x1]
        %v1060 = vld [vmem:[%s1050 + $0x24] sm:$0xf]
        %v1061 = vld [vmem:[%s1050 + $0x28] sm:$0xf]
        %v1062 = vld [vmem:[%s1050 + $0x2c] sm:$0x1]
        %v1063 = vld [vmem:[%s1050 + $0x30] sm:$0xf]
        %v1064 = vld [vmem:[%s1050 + $0x34] sm:$0xf]
        %v1065 = vld [vmem:[%s1050 + $0x38] sm:$0x1]
        %v1066 = vld [vmem:[%s1050 + $0x3c] sm:$0xf]
        %v1067 = vld [vmem:[%s1050 + $0x40] sm:$0xf]
        %v1068 = vld [vmem:[%s1050 + $0x44] sm:$0x1]
        %v1069 = vld [vmem:[%s1050 + $0x48] sm:$0xf]
        %v1070 = vld [vmem:[%s1050 + $0x4c] sm:$0xf]
        %v1071 = vld [vmem:[%s1050 + $0x50] sm:$0x1]
        %v1072 = vld [vmem:[%s1050 + $0x54] sm:$0xf]
        %v1073 = vld [vmem:[%s1050 + $0x58] sm:$0xf]
        %v1074 = vld [vmem:[%s1050 + $0x5c] sm:$0x1]
        %s1075 = scalar_lea.vmem %s1, 48
        %v1076 = vld [vmem:[%s1075] sm:$0xf]
        %v1077 = vld [vmem:[%s1075 + $0x4] sm:$0xf]
        %v1078 = vld [vmem:[%s1075 + $0x8] sm:$0xf]
        %v1079 = vld [vmem:[%s1075 + $0xc] sm:$0xf]
        %v1096 = vunpack.c.l.b16 %v1051
        %v1097 = vunpack.c.l.b16 %v1052
        %v1098 = vunpack.c.l.b16 %v1054
        %v1099 = vunpack.c.l.b16 %v1055
        %v1100 = vunpack.c.l.b16 %v1057
        %v1101 = vunpack.c.l.b16 %v1058
        %v1102 = vunpack.c.l.b16 %v1060
        %v1103 = vunpack.c.l.b16 %v1061
        %v1104 = vunpack.c.l.b16 %v1063
        %v1105 = vunpack.c.l.b16 %v1064
        %v1106 = vunpack.c.l.b16 %v1066
        %v1107 = vunpack.c.l.b16 %v1067
        %v1108 = vunpack.c.l.b16 %v1069
        %v1109 = vunpack.c.l.b16 %v1070
        %v1110 = vunpack.c.l.b16 %v1072
        %v1111 = vunpack.c.l.b16 %v1073
        %v1112 = vpack.c.b16 %v1097, %v1096
        %v1113 = vpack.c.b16 %v1099, %v1098
        %v1114 = vpack.c.b16 %v1101, %v1100
        %v1115 = vpack.c.b16 %v1103, %v1102
        %v1116 = vpack.c.b16 %v1105, %v1104
        %v1117 = vpack.c.b16 %v1107, %v1106
        %v1118 = vpack.c.b16 %v1109, %v1108
        %v1119 = vpack.c.b16 %v1111, %v1110
        %v1124 = vunpack.c.l.b16 %v1076
        %v1125 = vunpack.c.l.b16 %v1077
        %v1126 = vunpack.c.l.b16 %v1078
        %v1127 = vunpack.c.l.b16 %v1079
        %v1128 = vpack.c.b16 %v1125, %v1124
        %v1129 = vpack.c.b16 %v1127, %v1126
        %v1133 = vsel %vm507, %v1112, 0
        %v1136 = vsel %vm507, %v1113, 0
        %v1139 = vsel %vm507, %v1114, 0
        %v1142 = vsel %vm507, %v1115, 0
        %v1145 = vsel %vm507, %v1116, 0
        %v1148 = vsel %vm507, %v1117, 0
        %v1151 = vsel %vm507, %v1118, 0
        %v1154 = vsel %vm507, %v1119, 0
        %1156 = vmatprep.subr.bf16.mxu0 0
        %1157 = vmatpush1.bf16.msra.mxu0 %v1128
        %1158 = vmatprep.subr.bf16.mxu0 0
        %1159 = vmatpush1.bf16.msra.mxu0 %v1129
        %1160 = vmatprep.subr.bf16.mxu0 0
        %1161 = vmatpush1.bf16.msra.mxu0 0
        %1162 = vmatprep.subr.bf16.mxu0 0
        %1163 = vmatpush1.bf16.msra.mxu0 0
        %1164 = vmatprep.subr.bf16.mxu0 0
        %1165 = vmatpush1.bf16.msra.mxu0 0
        %1166 = vmatprep.subr.bf16.mxu0 0
        %1167 = vmatpush1.bf16.msra.mxu0 0
        %1168 = vmatprep.subr.bf16.mxu0 0
        %1169 = vmatpush1.bf16.msra.mxu0 0
        %1170 = vmatprep.subr.bf16.mxu0 0
        %1171 = vmatpush1.bf16.msra.mxu0 0
        %1172 = vmatprep.subr.bf16.mxu0 0
        %1173 = vmatpush1.bf16.msra.mxu0 0
        %1174 = vmatprep.subr.bf16.mxu0 0
        %1175 = vmatpush1.bf16.msra.mxu0 0
        %1176 = vmatprep.subr.bf16.mxu0 0
        %1177 = vmatpush1.bf16.msra.mxu0 0
        %1178 = vmatprep.subr.bf16.mxu0 0
        %1179 = vmatpush1.bf16.msra.mxu0 0
        %1180 = vmatprep.subr.bf16.mxu0 0
        %1181 = vmatpush1.bf16.msra.mxu0 0
        %1182 = vmatprep.subr.bf16.mxu0 0
        %1183 = vmatpush1.bf16.msra.mxu0 0
        %1184 = vmatprep.subr.bf16.mxu0 0
        %1185 = vmatpush1.bf16.msra.mxu0 0
        %1186 = vmatprep.subr.bf16.mxu0 0
        %1187 = vmatpush1.bf16.msra.mxu0 0
        %1188 = vmatprep.mubr.bf16.mxu0 0
        %1189 = vmatmul.mubr.bf16.gmra.mrb[0].mxu0 %v1133
        %v1190 = vpop.f32.mrb[0].mxu0
        %v1191 = vadd.f32 0.0, %v1190
        %v1192 = vpop.f32.mrb[0].mxu0
        %v1193 = vpop.f32.mrb[0].mxu0
        %v1194 = vadd.f32 0.0, %v1193
        %v1195 = vpop.f32.mrb[0].mxu0
        %1196 = vmatprep.mubr.bf16.mxu0 0
        %1197 = vmatmul.mubr.bf16.gmra.mrb[0].mxu0 %v1136
        %v1198 = vpop.f32.mrb[0].mxu0
        %v1199 = vadd.f32 0.0, %v1198
        %v1200 = vpop.f32.mrb[0].mxu0
        %v1201 = vpop.f32.mrb[0].mxu0
        %v1202 = vadd.f32 0.0, %v1201
        %v1203 = vpop.f32.mrb[0].mxu0
        %1204 = vmatprep.mubr.bf16.mxu0 0
        %1205 = vmatmul.mubr.bf16.gmra.mrb[0].mxu0 %v1139
        %v1206 = vpop.f32.mrb[0].mxu0
        %v1207 = vadd.f32 0.0, %v1206
        %v1208 = vpop.f32.mrb[0].mxu0
        %v1209 = vpop.f32.mrb[0].mxu0
        %v1210 = vadd.f32 0.0, %v1209
        %v1211 = vpop.f32.mrb[0].mxu0
        %1212 = vmatprep.mubr.bf16.mxu0 0
        %1213 = vmatmul.mubr.bf16.gmra.mrb[0].mxu0 %v1142
        %v1214 = vpop.f32.mrb[0].mxu0
        %v1215 = vadd.f32 0.0, %v1214
        %v1216 = vpop.f32.mrb[0].mxu0
        %v1217 = vpop.f32.mrb[0].mxu0
        %v1218 = vadd.f32 0.0, %v1217
        %v1219 = vpop.f32.mrb[0].mxu0
        %1220 = vmatprep.mubr.bf16.mxu0 0
        %1221 = vmatmul.mubr.bf16.gmra.mrb[0].mxu0 %v1145
        %v1222 = vpop.f32.mrb[0].mxu0
        %v1223 = vadd.f32 0.0, %v1222
        %v1224 = vpop.f32.mrb[0].mxu0
        %v1225 = vpop.f32.mrb[0].mxu0
        %v1226 = vadd.f32 0.0, %v1225
        %v1227 = vpop.f32.mrb[0].mxu0
        %1228 = vmatprep.mubr.bf16.mxu0 0
        %1229 = vmatmul.mubr.bf16.gmra.mrb[0].mxu0 %v1148
        %v1230 = vpop.f32.mrb[0].mxu0
        %v1231 = vadd.f32 0.0, %v1230
        %v1232 = vpop.f32.mrb[0].mxu0
        %v1233 = vpop.f32.mrb[0].mxu0
        %v1234 = vadd.f32 0.0, %v1233
        %v1235 = vpop.f32.mrb[0].mxu0
        %1236 = vmatprep.mubr.bf16.mxu0 0
        %1237 = vmatmul.mubr.bf16.gmra.mrb[0].mxu0 %v1151
        %v1238 = vpop.f32.mrb[0].mxu0
        %v1239 = vadd.f32 0.0, %v1238
        %v1240 = vpop.f32.mrb[0].mxu0
        %v1241 = vpop.f32.mrb[0].mxu0
        %v1242 = vadd.f32 0.0, %v1241
        %v1243 = vpop.f32.mrb[0].mxu0
        %1244 = vmatprep.mubr.bf16.mxu0 0
        %1245 = vmatmul.mubr.bf16.gmra.mrb[0].mxu0 %v1154
        %v1246 = vpop.f32.mrb[0].mxu0
        %v1247 = vadd.f32 0.0, %v1246
        %v1248 = vpop.f32.mrb[0].mxu0
        %v1249 = vpop.f32.mrb[0].mxu0
        %v1250 = vadd.f32 0.0, %v1249
        %v1251 = vpop.f32.mrb[0].mxu0
        %1252 = vdwg.mxu0
        %v1253 = vadd.f32 %v1031, %v1191
        %v1254 = vadd.f32 %v1032, %v1194
        %v1255 = vadd.f32 %v1033, %v1199
        %v1256 = vadd.f32 %v1034, %v1202
        %v1257 = vadd.f32 %v1035, %v1207
        %v1258 = vadd.f32 %v1036, %v1210
        %v1259 = vadd.f32 %v1037, %v1215
        %v1260 = vadd.f32 %v1038, %v1218
        %v1261 = vadd.f32 %v1039, %v1223
        %v1262 = vadd.f32 %v1040, %v1226
        %v1263 = vadd.f32 %v1041, %v1231
        %v1264 = vadd.f32 %v1042, %v1234
        %v1265 = vadd.f32 %v1043, %v1239
        %v1266 = vadd.f32 %v1044, %v1242
        %v1267 = vadd.f32 %v1045, %v1247
        %v1268 = vadd.f32 %v1046, %v1250
        %v1270 = vshrl.u32 %v1051, 16
        %v1272 = vrot.slane %v1270, 4
        %v1273 = vshll.u32 %v1051, 16
        %v1275 = vrot.slane %v1273, 5
        %v1276 = vor.u32 %v1272, %v1275
        %v1277 = vrot.slane %v1276, 4
        %v1279 = vshll.u32 %v1052, 16
        %v1281 = vrot.slane %v1279, 5
        %v1282 = vsel %vm273, %v1277, %v1281
        %v1283 = vshrl.u32 %v1052, 16
        %v1285 = vrot.slane %v1283, 4
        %v1286 = vor.u32 %v1285, %v1281
        %v1287 = vrot.slane %v1286, 4
        %v1289 = vshll.u32 %v1053, 16
        %v1291 = vrot.slane %v1289, 5
        %v1292 = vsel %vm273, %v1287, %v1291
        %v1294 = vshrl.u32 %v1054, 16
        %v1296 = vrot.slane %v1294, 4
        %v1297 = vshll.u32 %v1054, 16
        %v1299 = vrot.slane %v1297, 5
        %v1300 = vor.u32 %v1296, %v1299
        %v1301 = vrot.slane %v1300, 4
        %v1303 = vshll.u32 %v1055, 16
        %v1305 = vrot.slane %v1303, 5
        %v1306 = vsel %vm273, %v1301, %v1305
        %v1307 = vshrl.u32 %v1055, 16
        %v1309 = vrot.slane %v1307, 4
        %v1310 = vor.u32 %v1309, %v1305
        %v1311 = vrot.slane %v1310, 4
        %v1313 = vshll.u32 %v1056, 16
        %v1315 = vrot.slane %v1313, 5
        %v1316 = vsel %vm273, %v1311, %v1315
        %v1318 = vshrl.u32 %v1057, 16
        %v1320 = vrot.slane %v1318, 4
        %v1321 = vshll.u32 %v1057, 16
        %v1323 = vrot.slane %v1321, 5
        %v1324 = vor.u32 %v1320, %v1323
        %v1325 = vrot.slane %v1324, 4
        %v1327 = vshll.u32 %v1058, 16
        %v1329 = vrot.slane %v1327, 5
        %v1330 = vsel %vm273, %v1325, %v1329
        %v1331 = vshrl.u32 %v1058, 16
        %v1333 = vrot.slane %v1331, 4
        %v1334 = vor.u32 %v1333, %v1329
        %v1335 = vrot.slane %v1334, 4
        %v1337 = vshll.u32 %v1059, 16
        %v1339 = vrot.slane %v1337, 5
        %v1340 = vsel %vm273, %v1335, %v1339
        %v1342 = vshrl.u32 %v1060, 16
        %v1344 = vrot.slane %v1342, 4
        %v1345 = vshll.u32 %v1060, 16
        %v1347 = vrot.slane %v1345, 5
        %v1348 = vor.u32 %v1344, %v1347
        %v1349 = vrot.slane %v1348, 4
        %v1351 = vshll.u32 %v1061, 16
        %v1353 = vrot.slane %v1351, 5
        %v1354 = vsel %vm273, %v1349, %v1353
        %v1355 = vshrl.u32 %v1061, 16
        %v1357 = vrot.slane %v1355, 4
        %v1358 = vor.u32 %v1357, %v1353
        %v1359 = vrot.slane %v1358, 4
        %v1361 = vshll.u32 %v1062, 16
        %v1363 = vrot.slane %v1361, 5
        %v1364 = vsel %vm273, %v1359, %v1363
        %v1366 = vshrl.u32 %v1063, 16
        %v1368 = vrot.slane %v1366, 4
        %v1369 = vshll.u32 %v1063, 16
        %v1371 = vrot.slane %v1369, 5
        %v1372 = vor.u32 %v1368, %v1371
        %v1373 = vrot.slane %v1372, 4
        %v1375 = vshll.u32 %v1064, 16
        %v1377 = vrot.slane %v1375, 5
        %v1378 = vsel %vm273, %v1373, %v1377
        %v1379 = vshrl.u32 %v1064, 16
        %v1381 = vrot.slane %v1379, 4
        %v1382 = vor.u32 %v1381, %v1377
        %v1383 = vrot.slane %v1382, 4
        %v1385 = vshll.u32 %v1065, 16
        %v1387 = vrot.slane %v1385, 5
        %v1388 = vsel %vm273, %v1383, %v1387
        %v1390 = vshrl.u32 %v1066, 16
        %v1392 = vrot.slane %v1390, 4
        %v1393 = vshll.u32 %v1066, 16
        %v1395 = vrot.slane %v1393, 5
        %v1396 = vor.u32 %v1392, %v1395
        %v1397 = vrot.slane %v1396, 4
        %v1399 = vshll.u32 %v1067, 16
        %v1401 = vrot.slane %v1399, 5
        %v1402 = vsel %vm273, %v1397, %v1401
        %v1403 = vshrl.u32 %v1067, 16
        %v1405 = vrot.slane %v1403, 4
        %v1406 = vor.u32 %v1405, %v1401
        %v1407 = vrot.slane %v1406, 4
        %v1409 = vshll.u32 %v1068, 16
        %v1411 = vrot.slane %v1409, 5
        %v1412 = vsel %vm273, %v1407, %v1411
        %v1414 = vshrl.u32 %v1069, 16
        %v1416 = vrot.slane %v1414, 4
        %v1417 = vshll.u32 %v1069, 16
        %v1419 = vrot.slane %v1417, 5
        %v1420 = vor.u32 %v1416, %v1419
        %v1421 = vrot.slane %v1420, 4
        %v1423 = vshll.u32 %v1070, 16
        %v1425 = vrot.slane %v1423, 5
        %v1426 = vsel %vm273, %v1421, %v1425
        %v1427 = vshrl.u32 %v1070, 16
        %v1429 = vrot.slane %v1427, 4
        %v1430 = vor.u32 %v1429, %v1425
        %v1431 = vrot.slane %v1430, 4
        %v1433 = vshll.u32 %v1071, 16
        %v1435 = vrot.slane %v1433, 5
        %v1436 = vsel %vm273, %v1431, %v1435
        %v1438 = vshrl.u32 %v1072, 16
        %v1440 = vrot.slane %v1438, 4
        %v1441 = vshll.u32 %v1072, 16
        %v1443 = vrot.slane %v1441, 5
        %v1444 = vor.u32 %v1440, %v1443
        %v1445 = vrot.slane %v1444, 4
        %v1447 = vshll.u32 %v1073, 16
        %v1449 = vrot.slane %v1447, 5
        %v1450 = vsel %vm273, %v1445, %v1449
        %v1451 = vshrl.u32 %v1073, 16
        %v1453 = vrot.slane %v1451, 4
        %v1454 = vor.u32 %v1453, %v1449
        %v1455 = vrot.slane %v1454, 4
        %v1457 = vshll.u32 %v1074, 16
        %v1459 = vrot.slane %v1457, 5
        %v1460 = vsel %vm273, %v1455, %v1459
        %s1461 = scalar_lea.vmem %s1, 64
        %v1462 = vld [vmem:[%s1461] sm:$0xf]
        %v1463 = vld [vmem:[%s1461 + $0x4] sm:$0xf]
        %v1464 = vld [vmem:[%s1461 + $0x8] sm:$0xf]
        %v1465 = vld [vmem:[%s1461 + $0xc] sm:$0xf]
        %v1466 = vunpack.c.l.b16 %v1282
        %v1467 = vunpack.c.l.b16 %v1292
        %v1468 = vunpack.c.l.b16 %v1306
        %v1469 = vunpack.c.l.b16 %v1316
        %v1470 = vunpack.c.l.b16 %v1330
        %v1471 = vunpack.c.l.b16 %v1340
        %v1472 = vunpack.c.l.b16 %v1354
        %v1473 = vunpack.c.l.b16 %v1364
        %v1474 = vunpack.c.l.b16 %v1378
        %v1475 = vunpack.c.l.b16 %v1388
        %v1476 = vunpack.c.l.b16 %v1402
        %v1477 = vunpack.c.l.b16 %v1412
        %v1478 = vunpack.c.l.b16 %v1426
        %v1479 = vunpack.c.l.b16 %v1436
        %v1480 = vunpack.c.l.b16 %v1450
        %v1481 = vunpack.c.l.b16 %v1460
        %v1482 = vpack.c.b16 %v1467, %v1466
        %v1483 = vpack.c.b16 %v1469, %v1468
        %v1484 = vpack.c.b16 %v1471, %v1470
        %v1485 = vpack.c.b16 %v1473, %v1472
        %v1486 = vpack.c.b16 %v1475, %v1474
        %v1487 = vpack.c.b16 %v1477, %v1476
        %v1488 = vpack.c.b16 %v1479, %v1478
        %v1489 = vpack.c.b16 %v1481, %v1480
        %v1494 = vunpack.c.l.b16 %v1462
        %v1495 = vunpack.c.l.b16 %v1463
        %v1496 = vunpack.c.l.b16 %v1464
        %v1497 = vunpack.c.l.b16 %v1465
        %v1498 = vpack.c.b16 %v1495, %v1494
        %v1499 = vpack.c.b16 %v1497, %v1496
        %v1503 = vsel %vm507, %v1482, 0
        %v1506 = vsel %vm507, %v1483, 0
        %v1509 = vsel %vm507, %v1484, 0
        %v1512 = vsel %vm507, %v1485, 0
        %v1515 = vsel %vm507, %v1486, 0
        %v1518 = vsel %vm507, %v1487, 0
        %v1521 = vsel %vm507, %v1488, 0
        %v1524 = vsel %vm507, %v1489, 0
        %1526 = vmatprep.subr.bf16.mxu0 0
        %1527 = vmatpush1.bf16.msra.mxu0 %v1498
        %1528 = vmatprep.subr.bf16.mxu0 0
        %1529 = vmatpush1.bf16.msra.mxu0 %v1499
        %1530 = vmatprep.subr.bf16.mxu0 0
        %1531 = vmatpush1.bf16.msra.mxu0 0
        %1532 = vmatprep.subr.bf16.mxu0 0
        %1533 = vmatpush1.bf16.msra.mxu0 0
        %1534 = vmatprep.subr.bf16.mxu0 0
        %1535 = vmatpush1.bf16.msra.mxu0 0
        %1536 = vmatprep.subr.bf16.mxu0 0
        %1537 = vmatpush1.bf16.msra.mxu0 0
        %1538 = vmatprep.subr.bf16.mxu0 0
        %1539 = vmatpush1.bf16.msra.mxu0 0
        %1540 = vmatprep.subr.bf16.mxu0 0
        %1541 = vmatpush1.bf16.msra.mxu0 0
        %1542 = vmatprep.subr.bf16.mxu0 0
        %1543 = vmatpush1.bf16.msra.mxu0 0
        %1544 = vmatprep.subr.bf16.mxu0 0
        %1545 = vmatpush1.bf16.msra.mxu0 0
        %1546 = vmatprep.subr.bf16.mxu0 0
        %1547 = vmatpush1.bf16.msra.mxu0 0
        %1548 = vmatprep.subr.bf16.mxu0 0
        %1549 = vmatpush1.bf16.msra.mxu0 0
        %1550 = vmatprep.subr.bf16.mxu0 0
        %1551 = vmatpush1.bf16.msra.mxu0 0
        %1552 = vmatprep.subr.bf16.mxu0 0
        %1553 = vmatpush1.bf16.msra.mxu0 0
        %1554 = vmatprep.subr.bf16.mxu0 0
        %1555 = vmatpush1.bf16.msra.mxu0 0
        %1556 = vmatprep.subr.bf16.mxu0 0
        %1557 = vmatpush1.bf16.msra.mxu0 0
        %1558 = vmatprep.mubr.bf16.mxu0 0
        %1559 = vmatmul.mubr.bf16.gmra.mrb[0].mxu0 %v1503
        %v1560 = vpop.f32.mrb[0].mxu0
        %v1561 = vadd.f32 0.0, %v1560
        %v1562 = vpop.f32.mrb[0].mxu0
        %v1563 = vpop.f32.mrb[0].mxu0
        %v1564 = vadd.f32 0.0, %v1563
        %v1565 = vpop.f32.mrb[0].mxu0
        %1566 = vmatprep.mubr.bf16.mxu0 0
        %1567 = vmatmul.mubr.bf16.gmra.mrb[0].mxu0 %v1506
        %v1568 = vpop.f32.mrb[0].mxu0
        %v1569 = vadd.f32 0.0, %v1568
        %v1570 = vpop.f32.mrb[0].mxu0
        %v1571 = vpop.f32.mrb[0].mxu0
        %v1572 = vadd.f32 0.0, %v1571
        %v1573 = vpop.f32.mrb[0].mxu0
        %1574 = vmatprep.mubr.bf16.mxu0 0
        %1575 = vmatmul.mubr.bf16.gmra.mrb[0].mxu0 %v1509
        %v1576 = vpop.f32.mrb[0].mxu0
        %v1577 = vadd.f32 0.0, %v1576
        %v1578 = vpop.f32.mrb[0].mxu0
        %v1579 = vpop.f32.mrb[0].mxu0
        %v1580 = vadd.f32 0.0, %v1579
        %v1581 = vpop.f32.mrb[0].mxu0
        %1582 = vmatprep.mubr.bf16.mxu0 0
        %1583 = vmatmul.mubr.bf16.gmra.mrb[0].mxu0 %v1512
        %v1584 = vpop.f32.mrb[0].mxu0
        %v1585 = vadd.f32 0.0, %v1584
        %v1586 = vpop.f32.mrb[0].mxu0
        %v1587 = vpop.f32.mrb[0].mxu0
        %v1588 = vadd.f32 0.0, %v1587
        %v1589 = vpop.f32.mrb[0].mxu0
        %1590 = vmatprep.mubr.bf16.mxu0 0
        %1591 = vmatmul.mubr.bf16.gmra.mrb[0].mxu0 %v1515
        %v1592 = vpop.f32.mrb[0].mxu0
        %v1593 = vadd.f32 0.0, %v1592
        %v1594 = vpop.f32.mrb[0].mxu0
        %v1595 = vpop.f32.mrb[0].mxu0
        %v1596 = vadd.f32 0.0, %v1595
        %v1597 = vpop.f32.mrb[0].mxu0
        %1598 = vmatprep.mubr.bf16.mxu0 0
        %1599 = vmatmul.mubr.bf16.gmra.mrb[0].mxu0 %v1518
        %v1600 = vpop.f32.mrb[0].mxu0
        %v1601 = vadd.f32 0.0, %v1600
        %v1602 = vpop.f32.mrb[0].mxu0
        %v1603 = vpop.f32.mrb[0].mxu0
        %v1604 = vadd.f32 0.0, %v1603
        %v1605 = vpop.f32.mrb[0].mxu0
        %1606 = vmatprep.mubr.bf16.mxu0 0
        %1607 = vmatmul.mubr.bf16.gmra.mrb[0].mxu0 %v1521
        %v1608 = vpop.f32.mrb[0].mxu0
        %v1609 = vadd.f32 0.0, %v1608
        %v1610 = vpop.f32.mrb[0].mxu0
        %v1611 = vpop.f32.mrb[0].mxu0
        %v1612 = vadd.f32 0.0, %v1611
        %v1613 = vpop.f32.mrb[0].mxu0
        %1614 = vmatprep.mubr.bf16.mxu0 0
        %1615 = vmatmul.mubr.bf16.gmra.mrb[0].mxu0 %v1524
        %v1616 = vpop.f32.mrb[0].mxu0
        %v1617 = vadd.f32 0.0, %v1616
        %v1618 = vpop.f32.mrb[0].mxu0
        %v1619 = vpop.f32.mrb[0].mxu0
        %v1620 = vadd.f32 0.0, %v1619
        %v1621 = vpop.f32.mrb[0].mxu0
        %1622 = vdwg.mxu0
        %v1623 = vadd.f32 %v1253, %v1561
        %v1624 = vadd.f32 %v1254, %v1564
        %v1625 = vadd.f32 %v1255, %v1569
        %v1626 = vadd.f32 %v1256, %v1572
        %v1627 = vadd.f32 %v1257, %v1577
        %v1628 = vadd.f32 %v1258, %v1580
        %v1629 = vadd.f32 %v1259, %v1585
        %v1630 = vadd.f32 %v1260, %v1588
        %v1631 = vadd.f32 %v1261, %v1593
        %v1632 = vadd.f32 %v1262, %v1596
        %v1633 = vadd.f32 %v1263, %v1601
        %v1634 = vadd.f32 %v1264, %v1604
        %v1635 = vadd.f32 %v1265, %v1609
        %v1636 = vadd.f32 %v1266, %v1612
        %v1637 = vadd.f32 %v1267, %v1617
        %v1638 = vadd.f32 %v1268, %v1620
        %v1647 = vrot.slane %v1051, 5
        %v1648 = vrot.slane %v1647, 4
        %v1649 = vrot.slane %v1052, 5
        %v1650 = vsel %vm812, %v1648, %v1649
        %v1651 = vrot.slane %v1649, 4
        %v1652 = vrot.slane %v1053, 5
        %v1653 = vsel %vm812, %v1651, %v1652
        %v1654 = vrot.slane %v1054, 5
        %v1655 = vrot.slane %v1654, 4
        %v1656 = vrot.slane %v1055, 5
        %v1657 = vsel %vm812, %v1655, %v1656
        %v1658 = vrot.slane %v1656, 4
        %v1659 = vrot.slane %v1056, 5
        %v1660 = vsel %vm812, %v1658, %v1659
        %v1661 = vrot.slane %v1057, 5
        %v1662 = vrot.slane %v1661, 4
        %v1663 = vrot.slane %v1058, 5
        %v1664 = vsel %vm812, %v1662, %v1663
        %v1665 = vrot.slane %v1663, 4
        %v1666 = vrot.slane %v1059, 5
        %v1667 = vsel %vm812, %v1665, %v1666
        %v1668 = vrot.slane %v1060, 5
        %v1669 = vrot.slane %v1668, 4
        %v1670 = vrot.slane %v1061, 5
        %v1671 = vsel %vm812, %v1669, %v1670
        %v1672 = vrot.slane %v1670, 4
        %v1673 = vrot.slane %v1062, 5
        %v1674 = vsel %vm812, %v1672, %v1673
        %v1675 = vrot.slane %v1063, 5
        %v1676 = vrot.slane %v1675, 4
        %v1677 = vrot.slane %v1064, 5
        %v1678 = vsel %vm812, %v1676, %v1677
        %v1679 = vrot.slane %v1677, 4
        %v1680 = vrot.slane %v1065, 5
        %v1681 = vsel %vm812, %v1679, %v1680
        %v1682 = vrot.slane %v1066, 5
        %v1683 = vrot.slane %v1682, 4
        %v1684 = vrot.slane %v1067, 5
        %v1685 = vsel %vm812, %v1683, %v1684
        %v1686 = vrot.slane %v1684, 4
        %v1687 = vrot.slane %v1068, 5
        %v1688 = vsel %vm812, %v1686, %v1687
        %v1689 = vrot.slane %v1069, 5
        %v1690 = vrot.slane %v1689, 4
        %v1691 = vrot.slane %v1070, 5
        %v1692 = vsel %vm812, %v1690, %v1691
        %v1693 = vrot.slane %v1691, 4
        %v1694 = vrot.slane %v1071, 5
        %v1695 = vsel %vm812, %v1693, %v1694
        %v1696 = vrot.slane %v1072, 5
        %v1697 = vrot.slane %v1696, 4
        %v1698 = vrot.slane %v1073, 5
        %v1699 = vsel %vm812, %v1697, %v1698
        %v1700 = vrot.slane %v1698, 4
        %v1701 = vrot.slane %v1074, 5
        %v1702 = vsel %vm812, %v1700, %v1701
        %s1703 = scalar_lea.vmem %s1, 80
        %v1704 = vld [vmem:[%s1703] sm:$0xf]
        %v1705 = vld [vmem:[%s1703 + $0x4] sm:$0xf]
        %v1706 = vld [vmem:[%s1703 + $0x8] sm:$0xf]
        %v1707 = vld [vmem:[%s1703 + $0xc] sm:$0xf]
        %v1708 = vunpack.c.l.b16 %v1650
        %v1709 = vunpack.c.l.b16 %v1653
        %v1710 = vunpack.c.l.b16 %v1657
        %v1711 = vunpack.c.l.b16 %v1660
        %v1712 = vunpack.c.l.b16 %v1664
        %v1713 = vunpack.c.l.b16 %v1667
        %v1714 = vunpack.c.l.b16 %v1671
        %v1715 = vunpack.c.l.b16 %v1674
        %v1716 = vunpack.c.l.b16 %v1678
        %v1717 = vunpack.c.l.b16 %v1681
        %v1718 = vunpack.c.l.b16 %v1685
        %v1719 = vunpack.c.l.b16 %v1688
        %v1720 = vunpack.c.l.b16 %v1692
        %v1721 = vunpack.c.l.b16 %v1695
        %v1722 = vunpack.c.l.b16 %v1699
        %v1723 = vunpack.c.l.b16 %v1702
        %v1724 = vpack.c.b16 %v1709, %v1708
        %v1725 = vpack.c.b16 %v1711, %v1710
        %v1726 = vpack.c.b16 %v1713, %v1712
        %v1727 = vpack.c.b16 %v1715, %v1714
        %v1728 = vpack.c.b16 %v1717, %v1716
        %v1729 = vpack.c.b16 %v1719, %v1718
        %v1730 = vpack.c.b16 %v1721, %v1720
        %v1731 = vpack.c.b16 %v1723, %v1722
        %v1736 = vunpack.c.l.b16 %v1704
        %v1737 = vunpack.c.l.b16 %v1705
        %v1738 = vunpack.c.l.b16 %v1706
        %v1739 = vunpack.c.l.b16 %v1707
        %v1740 = vpack.c.b16 %v1737, %v1736
        %v1741 = vpack.c.b16 %v1739, %v1738
        %v1745 = vsel %vm507, %v1724, 0
        %v1748 = vsel %vm507, %v1725, 0
        %v1751 = vsel %vm507, %v1726, 0
        %v1754 = vsel %vm507, %v1727, 0
        %v1757 = vsel %vm507, %v1728, 0
        %v1760 = vsel %vm507, %v1729, 0
        %v1763 = vsel %vm507, %v1730, 0
        %v1766 = vsel %vm507, %v1731, 0
        %1768 = vmatprep.subr.bf16.mxu0 0
        %1769 = vmatpush1.bf16.msra.mxu0 %v1740
        %1770 = vmatprep.subr.bf16.mxu0 0
        %1771 = vmatpush1.bf16.msra.mxu0 %v1741
        %1772 = vmatprep.subr.bf16.mxu0 0
        %1773 = vmatpush1.bf16.msra.mxu0 0
        %1774 = vmatprep.subr.bf16.mxu0 0
        %1775 = vmatpush1.bf16.msra.mxu0 0
        %1776 = vmatprep.subr.bf16.mxu0 0
        %1777 = vmatpush1.bf16.msra.mxu0 0
        %1778 = vmatprep.subr.bf16.mxu0 0
        %1779 = vmatpush1.bf16.msra.mxu0 0
        %1780 = vmatprep.subr.bf16.mxu0 0
        %1781 = vmatpush1.bf16.msra.mxu0 0
        %1782 = vmatprep.subr.bf16.mxu0 0
        %1783 = vmatpush1.bf16.msra.mxu0 0
        %1784 = vmatprep.subr.bf16.mxu0 0
        %1785 = vmatpush1.bf16.msra.mxu0 0
        %1786 = vmatprep.subr.bf16.mxu0 0
        %1787 = vmatpush1.bf16.msra.mxu0 0
        %1788 = vmatprep.subr.bf16.mxu0 0
        %1789 = vmatpush1.bf16.msra.mxu0 0
        %1790 = vmatprep.subr.bf16.mxu0 0
        %1791 = vmatpush1.bf16.msra.mxu0 0
        %1792 = vmatprep.subr.bf16.mxu0 0
        %1793 = vmatpush1.bf16.msra.mxu0 0
        %1794 = vmatprep.subr.bf16.mxu0 0
        %1795 = vmatpush1.bf16.msra.mxu0 0
        %1796 = vmatprep.subr.bf16.mxu0 0
        %1797 = vmatpush1.bf16.msra.mxu0 0
        %1798 = vmatprep.subr.bf16.mxu0 0
        %1799 = vmatpush1.bf16.msra.mxu0 0
        %1800 = vmatprep.mubr.bf16.mxu0 0
        %1801 = vmatmul.mubr.bf16.gmra.mrb[0].mxu0 %v1745
        %v1802 = vpop.f32.mrb[0].mxu0
        %v1803 = vadd.f32 0.0, %v1802
        %v1804 = vpop.f32.mrb[0].mxu0
        %v1805 = vpop.f32.mrb[0].mxu0
        %v1806 = vadd.f32 0.0, %v1805
        %v1807 = vpop.f32.mrb[0].mxu0
        %1808 = vmatprep.mubr.bf16.mxu0 0
        %1809 = vmatmul.mubr.bf16.gmra.mrb[0].mxu0 %v1748
        %v1810 = vpop.f32.mrb[0].mxu0
        %v1811 = vadd.f32 0.0, %v1810
        %v1812 = vpop.f32.mrb[0].mxu0
        %v1813 = vpop.f32.mrb[0].mxu0
        %v1814 = vadd.f32 0.0, %v1813
        %v1815 = vpop.f32.mrb[0].mxu0
        %1816 = vmatprep.mubr.bf16.mxu0 0
        %1817 = vmatmul.mubr.bf16.gmra.mrb[0].mxu0 %v1751
        %v1818 = vpop.f32.mrb[0].mxu0
        %v1819 = vadd.f32 0.0, %v1818
        %v1820 = vpop.f32.mrb[0].mxu0
        %v1821 = vpop.f32.mrb[0].mxu0
        %v1822 = vadd.f32 0.0, %v1821
        %v1823 = vpop.f32.mrb[0].mxu0
        %1824 = vmatprep.mubr.bf16.mxu0 0
        %1825 = vmatmul.mubr.bf16.gmra.mrb[0].mxu0 %v1754
        %v1826 = vpop.f32.mrb[0].mxu0
        %v1827 = vadd.f32 0.0, %v1826
        %v1828 = vpop.f32.mrb[0].mxu0
        %v1829 = vpop.f32.mrb[0].mxu0
        %v1830 = vadd.f32 0.0, %v1829
        %v1831 = vpop.f32.mrb[0].mxu0
        %1832 = vmatprep.mubr.bf16.mxu0 0
        %1833 = vmatmul.mubr.bf16.gmra.mrb[0].mxu0 %v1757
        %v1834 = vpop.f32.mrb[0].mxu0
        %v1835 = vadd.f32 0.0, %v1834
        %v1836 = vpop.f32.mrb[0].mxu0
        %v1837 = vpop.f32.mrb[0].mxu0
        %v1838 = vadd.f32 0.0, %v1837
        %v1839 = vpop.f32.mrb[0].mxu0
        %1840 = vmatprep.mubr.bf16.mxu0 0
        %1841 = vmatmul.mubr.bf16.gmra.mrb[0].mxu0 %v1760
        %v1842 = vpop.f32.mrb[0].mxu0
        %v1843 = vadd.f32 0.0, %v1842
        %v1844 = vpop.f32.mrb[0].mxu0
        %v1845 = vpop.f32.mrb[0].mxu0
        %v1846 = vadd.f32 0.0, %v1845
        %v1847 = vpop.f32.mrb[0].mxu0
        %1848 = vmatprep.mubr.bf16.mxu0 0
        %1849 = vmatmul.mubr.bf16.gmra.mrb[0].mxu0 %v1763
        %v1850 = vpop.f32.mrb[0].mxu0
        %v1851 = vadd.f32 0.0, %v1850
        %v1852 = vpop.f32.mrb[0].mxu0
        %v1853 = vpop.f32.mrb[0].mxu0
        %v1854 = vadd.f32 0.0, %v1853
        %v1855 = vpop.f32.mrb[0].mxu0
        %1856 = vmatprep.mubr.bf16.mxu0 0
        %1857 = vmatmul.mubr.bf16.gmra.mrb[0].mxu0 %v1766
        %v1858 = vpop.f32.mrb[0].mxu0
        %v1859 = vadd.f32 0.0, %v1858
        %v1860 = vpop.f32.mrb[0].mxu0
        %v1861 = vpop.f32.mrb[0].mxu0
        %v1862 = vadd.f32 0.0, %v1861
        %v1863 = vpop.f32.mrb[0].mxu0
        %1864 = vdwg.mxu0
        %v1865 = vadd.f32 %v1623, %v1803
        %v1866 = vadd.f32 %v1624, %v1806
        %v1867 = vadd.f32 %v1625, %v1811
        %v1868 = vadd.f32 %v1626, %v1814
        %v1869 = vadd.f32 %v1627, %v1819
        %v1870 = vadd.f32 %v1628, %v1822
        %v1871 = vadd.f32 %v1629, %v1827
        %v1872 = vadd.f32 %v1630, %v1830
        %v1873 = vadd.f32 %v1631, %v1835
        %v1874 = vadd.f32 %v1632, %v1838
        %v1875 = vadd.f32 %v1633, %v1843
        %v1876 = vadd.f32 %v1634, %v1846
        %v1877 = vadd.f32 %v1635, %v1851
        %v1878 = vadd.f32 %v1636, %v1854
        %v1879 = vadd.f32 %v1637, %v1859
        %v1880 = vadd.f32 %v1638, %v1862
        %s1881 = sadd.s32 %s239, 2
        %s1882 = smul.u32 %s1881, 3
        %s1883 = smul.addr %s1882, 4
        %s1884 = scalar_lea.vmem %s236, %s1883
        %v1885 = vld [vmem:[%s1884] sm:$0xf]
        %v1886 = vld [vmem:[%s1884 + $0x4] sm:$0xf]
        %v1887 = vld [vmem:[%s1884 + $0x8] sm:$0x1]
        %v1888 = vld [vmem:[%s1884 + $0xc] sm:$0xf]
        %v1889 = vld [vmem:[%s1884 + $0x10] sm:$0xf]
        %v1890 = vld [vmem:[%s1884 + $0x14] sm:$0x1]
        %v1891 = vld [vmem:[%s1884 + $0x18] sm:$0xf]
        %v1892 = vld [vmem:[%s1884 + $0x1c] sm:$0xf]
        %v1893 = vld [vmem:[%s1884 + $0x20] sm:$0x1]
        %v1894 = vld [vmem:[%s1884 + $0x24] sm:$0xf]
        %v1895 = vld [vmem:[%s1884 + $0x28] sm:$0xf]
        %v1896 = vld [vmem:[%s1884 + $0x2c] sm:$0x1]
        %v1897 = vld [vmem:[%s1884 + $0x30] sm:$0xf]
        %v1898 = vld [vmem:[%s1884 + $0x34] sm:$0xf]
        %v1899 = vld [vmem:[%s1884 + $0x38] sm:$0x1]
        %v1900 = vld [vmem:[%s1884 + $0x3c] sm:$0xf]
        %v1901 = vld [vmem:[%s1884 + $0x40] sm:$0xf]
        %v1902 = vld [vmem:[%s1884 + $0x44] sm:$0x1]
        %v1903 = vld [vmem:[%s1884 + $0x48] sm:$0xf]
        %v1904 = vld [vmem:[%s1884 + $0x4c] sm:$0xf]
        %v1905 = vld [vmem:[%s1884 + $0x50] sm:$0x1]
        %v1906 = vld [vmem:[%s1884 + $0x54] sm:$0xf]
        %v1907 = vld [vmem:[%s1884 + $0x58] sm:$0xf]
        %v1908 = vld [vmem:[%s1884 + $0x5c] sm:$0x1]
        %s1909 = scalar_lea.vmem %s1, 96
        %v1910 = vld [vmem:[%s1909] sm:$0xf]
        %v1911 = vld [vmem:[%s1909 + $0x4] sm:$0xf]
        %v1912 = vld [vmem:[%s1909 + $0x8] sm:$0xf]
        %v1913 = vld [vmem:[%s1909 + $0xc] sm:$0xf]
        %v1930 = vunpack.c.l.b16 %v1885
        %v1931 = vunpack.c.l.b16 %v1886
        %v1932 = vunpack.c.l.b16 %v1888
        %v1933 = vunpack.c.l.b16 %v1889
        %v1934 = vunpack.c.l.b16 %v1891
        %v1935 = vunpack.c.l.b16 %v1892
        %v1936 = vunpack.c.l.b16 %v1894
        %v1937 = vunpack.c.l.b16 %v1895
        %v1938 = vunpack.c.l.b16 %v1897
        %v1939 = vunpack.c.l.b16 %v1898
        %v1940 = vunpack.c.l.b16 %v1900
        %v1941 = vunpack.c.l.b16 %v1901
        %v1942 = vunpack.c.l.b16 %v1903
        %v1943 = vunpack.c.l.b16 %v1904
        %v1944 = vunpack.c.l.b16 %v1906
        %v1945 = vunpack.c.l.b16 %v1907
        %v1946 = vpack.c.b16 %v1931, %v1930
        %v1947 = vpack.c.b16 %v1933, %v1932
        %v1948 = vpack.c.b16 %v1935, %v1934
        %v1949 = vpack.c.b16 %v1937, %v1936
        %v1950 = vpack.c.b16 %v1939, %v1938
        %v1951 = vpack.c.b16 %v1941, %v1940
        %v1952 = vpack.c.b16 %v1943, %v1942
        %v1953 = vpack.c.b16 %v1945, %v1944
        %v1958 = vunpack.c.l.b16 %v1910
        %v1959 = vunpack.c.l.b16 %v1911
        %v1960 = vunpack.c.l.b16 %v1912
        %v1961 = vunpack.c.l.b16 %v1913
        %v1962 = vpack.c.b16 %v1959, %v1958
        %v1963 = vpack.c.b16 %v1961, %v1960
        %v1967 = vsel %vm507, %v1946, 0
        %v1970 = vsel %vm507, %v1947, 0
        %v1973 = vsel %vm507, %v1948, 0
        %v1976 = vsel %vm507, %v1949, 0
        %v1979 = vsel %vm507, %v1950, 0
        %v1982 = vsel %vm507, %v1951, 0
        %v1985 = vsel %vm507, %v1952, 0
        %v1988 = vsel %vm507, %v1953, 0
        %1990 = vmatprep.subr.bf16.mxu0 0
        %1991 = vmatpush1.bf16.msra.mxu0 %v1962
        %1992 = vmatprep.subr.bf16.mxu0 0
        %1993 = vmatpush1.bf16.msra.mxu0 %v1963
        %1994 = vmatprep.subr.bf16.mxu0 0
        %1995 = vmatpush1.bf16.msra.mxu0 0
        %1996 = vmatprep.subr.bf16.mxu0 0
        %1997 = vmatpush1.bf16.msra.mxu0 0
        %1998 = vmatprep.subr.bf16.mxu0 0
        %1999 = vmatpush1.bf16.msra.mxu0 0
        %2000 = vmatprep.subr.bf16.mxu0 0
        %2001 = vmatpush1.bf16.msra.mxu0 0
        %2002 = vmatprep.subr.bf16.mxu0 0
        %2003 = vmatpush1.bf16.msra.mxu0 0
        %2004 = vmatprep.subr.bf16.mxu0 0
        %2005 = vmatpush1.bf16.msra.mxu0 0
        %2006 = vmatprep.subr.bf16.mxu0 0
        %2007 = vmatpush1.bf16.msra.mxu0 0
        %2008 = vmatprep.subr.bf16.mxu0 0
        %2009 = vmatpush1.bf16.msra.mxu0 0
        %2010 = vmatprep.subr.bf16.mxu0 0
        %2011 = vmatpush1.bf16.msra.mxu0 0
        %2012 = vmatprep.subr.bf16.mxu0 0
        %2013 = vmatpush1.bf16.msra.mxu0 0
        %2014 = vmatprep.subr.bf16.mxu0 0
        %2015 = vmatpush1.bf16.msra.mxu0 0
        %2016 = vmatprep.subr.bf16.mxu0 0
        %2017 = vmatpush1.bf16.msra.mxu0 0
        %2018 = vmatprep.subr.bf16.mxu0 0
        %2019 = vmatpush1.bf16.msra.mxu0 0
        %2020 = vmatprep.subr.bf16.mxu0 0
        %2021 = vmatpush1.bf16.msra.mxu0 0
        %2022 = vmatprep.mubr.bf16.mxu0 0
        %2023 = vmatmul.mubr.bf16.gmra.mrb[0].mxu0 %v1967
        %v2024 = vpop.f32.mrb[0].mxu0
        %v2025 = vadd.f32 0.0, %v2024
        %v2026 = vpop.f32.mrb[0].mxu0
        %v2027 = vpop.f32.mrb[0].mxu0
        %v2028 = vadd.f32 0.0, %v2027
        %v2029 = vpop.f32.mrb[0].mxu0
        %2030 = vmatprep.mubr.bf16.mxu0 0
        %2031 = vmatmul.mubr.bf16.gmra.mrb[0].mxu0 %v1970
        %v2032 = vpop.f32.mrb[0].mxu0
        %v2033 = vadd.f32 0.0, %v2032
        %v2034 = vpop.f32.mrb[0].mxu0
        %v2035 = vpop.f32.mrb[0].mxu0
        %v2036 = vadd.f32 0.0, %v2035
        %v2037 = vpop.f32.mrb[0].mxu0
        %2038 = vmatprep.mubr.bf16.mxu0 0
        %2039 = vmatmul.mubr.bf16.gmra.mrb[0].mxu0 %v1973
        %v2040 = vpop.f32.mrb[0].mxu0
        %v2041 = vadd.f32 0.0, %v2040
        %v2042 = vpop.f32.mrb[0].mxu0
        %v2043 = vpop.f32.mrb[0].mxu0
        %v2044 = vadd.f32 0.0, %v2043
        %v2045 = vpop.f32.mrb[0].mxu0
        %2046 = vmatprep.mubr.bf16.mxu0 0
        %2047 = vmatmul.mubr.bf16.gmra.mrb[0].mxu0 %v1976
        %v2048 = vpop.f32.mrb[0].mxu0
        %v2049 = vadd.f32 0.0, %v2048
        %v2050 = vpop.f32.mrb[0].mxu0
        %v2051 = vpop.f32.mrb[0].mxu0
        %v2052 = vadd.f32 0.0, %v2051
        %v2053 = vpop.f32.mrb[0].mxu0
        %2054 = vmatprep.mubr.bf16.mxu0 0
        %2055 = vmatmul.mubr.bf16.gmra.mrb[0].mxu0 %v1979
        %v2056 = vpop.f32.mrb[0].mxu0
        %v2057 = vadd.f32 0.0, %v2056
        %v2058 = vpop.f32.mrb[0].mxu0
        %v2059 = vpop.f32.mrb[0].mxu0
        %v2060 = vadd.f32 0.0, %v2059
        %v2061 = vpop.f32.mrb[0].mxu0
        %2062 = vmatprep.mubr.bf16.mxu0 0
        %2063 = vmatmul.mubr.bf16.gmra.mrb[0].mxu0 %v1982
        %v2064 = vpop.f32.mrb[0].mxu0
        %v2065 = vadd.f32 0.0, %v2064
        %v2066 = vpop.f32.mrb[0].mxu0
        %v2067 = vpop.f32.mrb[0].mxu0
        %v2068 = vadd.f32 0.0, %v2067
        %v2069 = vpop.f32.mrb[0].mxu0
        %2070 = vmatprep.mubr.bf16.mxu0 0
        %2071 = vmatmul.mubr.bf16.gmra.mrb[0].mxu0 %v1985
        %v2072 = vpop.f32.mrb[0].mxu0
        %v2073 = vadd.f32 0.0, %v2072
        %v2074 = vpop.f32.mrb[0].mxu0
        %v2075 = vpop.f32.mrb[0].mxu0
        %v2076 = vadd.f32 0.0, %v2075
        %v2077 = vpop.f32.mrb[0].mxu0
        %2078 = vmatprep.mubr.bf16.mxu0 0
        %2079 = vmatmul.mubr.bf16.gmra.mrb[0].mxu0 %v1988
        %v2080 = vpop.f32.mrb[0].mxu0
        %v2081 = vadd.f32 0.0, %v2080
        %v2082 = vpop.f32.mrb[0].mxu0
        %v2083 = vpop.f32.mrb[0].mxu0
        %v2084 = vadd.f32 0.0, %v2083
        %v2085 = vpop.f32.mrb[0].mxu0
        %2086 = vdwg.mxu0
        %v2087 = vadd.f32 %v1865, %v2025
        %v2088 = vadd.f32 %v1866, %v2028
        %v2089 = vadd.f32 %v1867, %v2033
        %v2090 = vadd.f32 %v1868, %v2036
        %v2091 = vadd.f32 %v1869, %v2041
        %v2092 = vadd.f32 %v1870, %v2044
        %v2093 = vadd.f32 %v1871, %v2049
        %v2094 = vadd.f32 %v1872, %v2052
        %v2095 = vadd.f32 %v1873, %v2057
        %v2096 = vadd.f32 %v1874, %v2060
        %v2097 = vadd.f32 %v1875, %v2065
        %v2098 = vadd.f32 %v1876, %v2068
        %v2099 = vadd.f32 %v1877, %v2073
        %v2100 = vadd.f32 %v1878, %v2076
        %v2101 = vadd.f32 %v1879, %v2081
        %v2102 = vadd.f32 %v1880, %v2084
        %v2104 = vshrl.u32 %v1885, 16
        %v2106 = vrot.slane %v2104, 4
        %v2107 = vshll.u32 %v1885, 16
        %v2109 = vrot.slane %v2107, 5
        %v2110 = vor.u32 %v2106, %v2109
        %v2111 = vrot.slane %v2110, 4
        %v2113 = vshll.u32 %v1886, 16
        %v2115 = vrot.slane %v2113, 5
        %v2116 = vsel %vm273, %v2111, %v2115
        %v2117 = vshrl.u32 %v1886, 16
        %v2119 = vrot.slane %v2117, 4
        %v2120 = vor.u32 %v2119, %v2115
        %v2121 = vrot.slane %v2120, 4
        %v2123 = vshll.u32 %v1887, 16
        %v2125 = vrot.slane %v2123, 5
        %v2126 = vsel %vm273, %v2121, %v2125
        %v2128 = vshrl.u32 %v1888, 16
        %v2130 = vrot.slane %v2128, 4
        %v2131 = vshll.u32 %v1888, 16
        %v2133 = vrot.slane %v2131, 5
        %v2134 = vor.u32 %v2130, %v2133
        %v2135 = vrot.slane %v2134, 4
        %v2137 = vshll.u32 %v1889, 16
        %v2139 = vrot.slane %v2137, 5
        %v2140 = vsel %vm273, %v2135, %v2139
        %v2141 = vshrl.u32 %v1889, 16
        %v2143 = vrot.slane %v2141, 4
        %v2144 = vor.u32 %v2143, %v2139
        %v2145 = vrot.slane %v2144, 4
        %v2147 = vshll.u32 %v1890, 16
        %v2149 = vrot.slane %v2147, 5
        %v2150 = vsel %vm273, %v2145, %v2149
        %v2152 = vshrl.u32 %v1891, 16
        %v2154 = vrot.slane %v2152, 4
        %v2155 = vshll.u32 %v1891, 16
        %v2157 = vrot.slane %v2155, 5
        %v2158 = vor.u32 %v2154, %v2157
        %v2159 = vrot.slane %v2158, 4
        %v2161 = vshll.u32 %v1892, 16
        %v2163 = vrot.slane %v2161, 5
        %v2164 = vsel %vm273, %v2159, %v2163
        %v2165 = vshrl.u32 %v1892, 16
        %v2167 = vrot.slane %v2165, 4
        %v2168 = vor.u32 %v2167, %v2163
        %v2169 = vrot.slane %v2168, 4
        %v2171 = vshll.u32 %v1893, 16
        %v2173 = vrot.slane %v2171, 5
        %v2174 = vsel %vm273, %v2169, %v2173
        %v2176 = vshrl.u32 %v1894, 16
        %v2178 = vrot.slane %v2176, 4
        %v2179 = vshll.u32 %v1894, 16
        %v2181 = vrot.slane %v2179, 5
        %v2182 = vor.u32 %v2178, %v2181
        %v2183 = vrot.slane %v2182, 4
        %v2185 = vshll.u32 %v1895, 16
        %v2187 = vrot.slane %v2185, 5
        %v2188 = vsel %vm273, %v2183, %v2187
        %v2189 = vshrl.u32 %v1895, 16
        %v2191 = vrot.slane %v2189, 4
        %v2192 = vor.u32 %v2191, %v2187
        %v2193 = vrot.slane %v2192, 4
        %v2195 = vshll.u32 %v1896, 16
        %v2197 = vrot.slane %v2195, 5
        %v2198 = vsel %vm273, %v2193, %v2197
        %v2200 = vshrl.u32 %v1897, 16
        %v2202 = vrot.slane %v2200, 4
        %v2203 = vshll.u32 %v1897, 16
        %v2205 = vrot.slane %v2203, 5
        %v2206 = vor.u32 %v2202, %v2205
        %v2207 = vrot.slane %v2206, 4
        %v2209 = vshll.u32 %v1898, 16
        %v2211 = vrot.slane %v2209, 5
        %v2212 = vsel %vm273, %v2207, %v2211
        %v2213 = vshrl.u32 %v1898, 16
        %v2215 = vrot.slane %v2213, 4
        %v2216 = vor.u32 %v2215, %v2211
        %v2217 = vrot.slane %v2216, 4
        %v2219 = vshll.u32 %v1899, 16
        %v2221 = vrot.slane %v2219, 5
        %v2222 = vsel %vm273, %v2217, %v2221
        %v2224 = vshrl.u32 %v1900, 16
        %v2226 = vrot.slane %v2224, 4
        %v2227 = vshll.u32 %v1900, 16
        %v2229 = vrot.slane %v2227, 5
        %v2230 = vor.u32 %v2226, %v2229
        %v2231 = vrot.slane %v2230, 4
        %v2233 = vshll.u32 %v1901, 16
        %v2235 = vrot.slane %v2233, 5
        %v2236 = vsel %vm273, %v2231, %v2235
        %v2237 = vshrl.u32 %v1901, 16
        %v2239 = vrot.slane %v2237, 4
        %v2240 = vor.u32 %v2239, %v2235
        %v2241 = vrot.slane %v2240, 4
        %v2243 = vshll.u32 %v1902, 16
        %v2245 = vrot.slane %v2243, 5
        %v2246 = vsel %vm273, %v2241, %v2245
        %v2248 = vshrl.u32 %v1903, 16
        %v2250 = vrot.slane %v2248, 4
        %v2251 = vshll.u32 %v1903, 16
        %v2253 = vrot.slane %v2251, 5
        %v2254 = vor.u32 %v2250, %v2253
        %v2255 = vrot.slane %v2254, 4
        %v2257 = vshll.u32 %v1904, 16
        %v2259 = vrot.slane %v2257, 5
        %v2260 = vsel %vm273, %v2255, %v2259
        %v2261 = vshrl.u32 %v1904, 16
        %v2263 = vrot.slane %v2261, 4
        %v2264 = vor.u32 %v2263, %v2259
        %v2265 = vrot.slane %v2264, 4
        %v2267 = vshll.u32 %v1905, 16
        %v2269 = vrot.slane %v2267, 5
        %v2270 = vsel %vm273, %v2265, %v2269
        %v2272 = vshrl.u32 %v1906, 16
        %v2274 = vrot.slane %v2272, 4
        %v2275 = vshll.u32 %v1906, 16
        %v2277 = vrot.slane %v2275, 5
        %v2278 = vor.u32 %v2274, %v2277
        %v2279 = vrot.slane %v2278, 4
        %v2281 = vshll.u32 %v1907, 16
        %v2283 = vrot.slane %v2281, 5
        %v2284 = vsel %vm273, %v2279, %v2283
        %v2285 = vshrl.u32 %v1907, 16
        %v2287 = vrot.slane %v2285, 4
        %v2288 = vor.u32 %v2287, %v2283
        %v2289 = vrot.slane %v2288, 4
        %v2291 = vshll.u32 %v1908, 16
        %v2293 = vrot.slane %v2291, 5
        %v2294 = vsel %vm273, %v2289, %v2293
        %s2295 = scalar_lea.vmem %s1, 112
        %v2296 = vld [vmem:[%s2295] sm:$0xf]
        %v2297 = vld [vmem:[%s2295 + $0x4] sm:$0xf]
        %v2298 = vld [vmem:[%s2295 + $0x8] sm:$0xf]
        %v2299 = vld [vmem:[%s2295 + $0xc] sm:$0xf]
        %v2300 = vunpack.c.l.b16 %v2116
        %v2301 = vunpack.c.l.b16 %v2126
        %v2302 = vunpack.c.l.b16 %v2140
        %v2303 = vunpack.c.l.b16 %v2150
        %v2304 = vunpack.c.l.b16 %v2164
        %v2305 = vunpack.c.l.b16 %v2174
        %v2306 = vunpack.c.l.b16 %v2188
        %v2307 = vunpack.c.l.b16 %v2198
        %v2308 = vunpack.c.l.b16 %v2212
        %v2309 = vunpack.c.l.b16 %v2222
        %v2310 = vunpack.c.l.b16 %v2236
        %v2311 = vunpack.c.l.b16 %v2246
        %v2312 = vunpack.c.l.b16 %v2260
        %v2313 = vunpack.c.l.b16 %v2270
        %v2314 = vunpack.c.l.b16 %v2284
        %v2315 = vunpack.c.l.b16 %v2294
        %v2316 = vpack.c.b16 %v2301, %v2300
        %v2317 = vpack.c.b16 %v2303, %v2302
        %v2318 = vpack.c.b16 %v2305, %v2304
        %v2319 = vpack.c.b16 %v2307, %v2306
        %v2320 = vpack.c.b16 %v2309, %v2308
        %v2321 = vpack.c.b16 %v2311, %v2310
        %v2322 = vpack.c.b16 %v2313, %v2312
        %v2323 = vpack.c.b16 %v2315, %v2314
        %v2328 = vunpack.c.l.b16 %v2296
        %v2329 = vunpack.c.l.b16 %v2297
        %v2330 = vunpack.c.l.b16 %v2298
        %v2331 = vunpack.c.l.b16 %v2299
        %v2332 = vpack.c.b16 %v2329, %v2328
        %v2333 = vpack.c.b16 %v2331, %v2330
        %v2337 = vsel %vm507, %v2316, 0
        %v2340 = vsel %vm507, %v2317, 0
        %v2343 = vsel %vm507, %v2318, 0
        %v2346 = vsel %vm507, %v2319, 0
        %v2349 = vsel %vm507, %v2320, 0
        %v2352 = vsel %vm507, %v2321, 0
        %v2355 = vsel %vm507, %v2322, 0
        %v2358 = vsel %vm507, %v2323, 0
        %2360 = vmatprep.subr.bf16.mxu0 0
        %2361 = vmatpush1.bf16.msra.mxu0 %v2332
        %2362 = vmatprep.subr.bf16.mxu0 0
        %2363 = vmatpush1.bf16.msra.mxu0 %v2333
        %2364 = vmatprep.subr.bf16.mxu0 0
        %2365 = vmatpush1.bf16.msra.mxu0 0
        %2366 = vmatprep.subr.bf16.mxu0 0
        %2367 = vmatpush1.bf16.msra.mxu0 0
        %2368 = vmatprep.subr.bf16.mxu0 0
        %2369 = vmatpush1.bf16.msra.mxu0 0
        %2370 = vmatprep.subr.bf16.mxu0 0
        %2371 = vmatpush1.bf16.msra.mxu0 0
        %2372 = vmatprep.subr.bf16.mxu0 0
        %2373 = vmatpush1.bf16.msra.mxu0 0
        %2374 = vmatprep.subr.bf16.mxu0 0
        %2375 = vmatpush1.bf16.msra.mxu0 0
        %2376 = vmatprep.subr.bf16.mxu0 0
        %2377 = vmatpush1.bf16.msra.mxu0 0
        %2378 = vmatprep.subr.bf16.mxu0 0
        %2379 = vmatpush1.bf16.msra.mxu0 0
        %2380 = vmatprep.subr.bf16.mxu0 0
        %2381 = vmatpush1.bf16.msra.mxu0 0
        %2382 = vmatprep.subr.bf16.mxu0 0
        %2383 = vmatpush1.bf16.msra.mxu0 0
        %2384 = vmatprep.subr.bf16.mxu0 0
        %2385 = vmatpush1.bf16.msra.mxu0 0
        %2386 = vmatprep.subr.bf16.mxu0 0
        %2387 = vmatpush1.bf16.msra.mxu0 0
        %2388 = vmatprep.subr.bf16.mxu0 0
        %2389 = vmatpush1.bf16.msra.mxu0 0
        %2390 = vmatprep.subr.bf16.mxu0 0
        %2391 = vmatpush1.bf16.msra.mxu0 0
        %2392 = vmatprep.mubr.bf16.mxu0 0
        %2393 = vmatmul.mubr.bf16.gmra.mrb[0].mxu0 %v2337
        %v2394 = vpop.f32.mrb[0].mxu0
        %v2395 = vadd.f32 0.0, %v2394
        %v2396 = vpop.f32.mrb[0].mxu0
        %v2397 = vpop.f32.mrb[0].mxu0
        %v2398 = vadd.f32 0.0, %v2397
        %v2399 = vpop.f32.mrb[0].mxu0
        %2400 = vmatprep.mubr.bf16.mxu0 0
        %2401 = vmatmul.mubr.bf16.gmra.mrb[0].mxu0 %v2340
        %v2402 = vpop.f32.mrb[0].mxu0
        %v2403 = vadd.f32 0.0, %v2402
        %v2404 = vpop.f32.mrb[0].mxu0
        %v2405 = vpop.f32.mrb[0].mxu0
        %v2406 = vadd.f32 0.0, %v2405
        %v2407 = vpop.f32.mrb[0].mxu0
        %2408 = vmatprep.mubr.bf16.mxu0 0
        %2409 = vmatmul.mubr.bf16.gmra.mrb[0].mxu0 %v2343
        %v2410 = vpop.f32.mrb[0].mxu0
        %v2411 = vadd.f32 0.0, %v2410
        %v2412 = vpop.f32.mrb[0].mxu0
        %v2413 = vpop.f32.mrb[0].mxu0
        %v2414 = vadd.f32 0.0, %v2413
        %v2415 = vpop.f32.mrb[0].mxu0
        %2416 = vmatprep.mubr.bf16.mxu0 0
        %2417 = vmatmul.mubr.bf16.gmra.mrb[0].mxu0 %v2346
        %v2418 = vpop.f32.mrb[0].mxu0
        %v2419 = vadd.f32 0.0, %v2418
        %v2420 = vpop.f32.mrb[0].mxu0
        %v2421 = vpop.f32.mrb[0].mxu0
        %v2422 = vadd.f32 0.0, %v2421
        %v2423 = vpop.f32.mrb[0].mxu0
        %2424 = vmatprep.mubr.bf16.mxu0 0
        %2425 = vmatmul.mubr.bf16.gmra.mrb[0].mxu0 %v2349
        %v2426 = vpop.f32.mrb[0].mxu0
        %v2427 = vadd.f32 0.0, %v2426
        %v2428 = vpop.f32.mrb[0].mxu0
        %v2429 = vpop.f32.mrb[0].mxu0
        %v2430 = vadd.f32 0.0, %v2429
        %v2431 = vpop.f32.mrb[0].mxu0
        %2432 = vmatprep.mubr.bf16.mxu0 0
        %2433 = vmatmul.mubr.bf16.gmra.mrb[0].mxu0 %v2352
        %v2434 = vpop.f32.mrb[0].mxu0
        %v2435 = vadd.f32 0.0, %v2434
        %v2436 = vpop.f32.mrb[0].mxu0
        %v2437 = vpop.f32.mrb[0].mxu0
        %v2438 = vadd.f32 0.0, %v2437
        %v2439 = vpop.f32.mrb[0].mxu0
        %2440 = vmatprep.mubr.bf16.mxu0 0
        %2441 = vmatmul.mubr.bf16.gmra.mrb[0].mxu0 %v2355
        %v2442 = vpop.f32.mrb[0].mxu0
        %v2443 = vadd.f32 0.0, %v2442
        %v2444 = vpop.f32.mrb[0].mxu0
        %v2445 = vpop.f32.mrb[0].mxu0
        %v2446 = vadd.f32 0.0, %v2445
        %v2447 = vpop.f32.mrb[0].mxu0
        %2448 = vmatprep.mubr.bf16.mxu0 0
        %2449 = vmatmul.mubr.bf16.gmra.mrb[0].mxu0 %v2358
        %v2450 = vpop.f32.mrb[0].mxu0
        %v2451 = vadd.f32 0.0, %v2450
        %v2452 = vpop.f32.mrb[0].mxu0
        %v2453 = vpop.f32.mrb[0].mxu0
        %v2454 = vadd.f32 0.0, %v2453
        %v2455 = vpop.f32.mrb[0].mxu0
        %2456 = vdwg.mxu0
        %v2457 = vadd.f32 %v2087, %v2395
        %v2458 = vadd.f32 %v2088, %v2398
        %v2459 = vadd.f32 %v2089, %v2403
        %v2460 = vadd.f32 %v2090, %v2406
        %v2461 = vadd.f32 %v2091, %v2411
        %v2462 = vadd.f32 %v2092, %v2414
        %v2463 = vadd.f32 %v2093, %v2419
        %v2464 = vadd.f32 %v2094, %v2422
        %v2465 = vadd.f32 %v2095, %v2427
        %v2466 = vadd.f32 %v2096, %v2430
        %v2467 = vadd.f32 %v2097, %v2435
        %v2468 = vadd.f32 %v2098, %v2438
        %v2469 = vadd.f32 %v2099, %v2443
        %v2470 = vadd.f32 %v2100, %v2446
        %v2471 = vadd.f32 %v2101, %v2451
        %v2472 = vadd.f32 %v2102, %v2454
        %v2481 = vrot.slane %v1885, 5
        %v2482 = vrot.slane %v2481, 4
        %v2483 = vrot.slane %v1886, 5
        %v2484 = vsel %vm812, %v2482, %v2483
        %v2485 = vrot.slane %v2483, 4
        %v2486 = vrot.slane %v1887, 5
        %v2487 = vsel %vm812, %v2485, %v2486
        %v2488 = vrot.slane %v1888, 5
        %v2489 = vrot.slane %v2488, 4
        %v2490 = vrot.slane %v1889, 5
        %v2491 = vsel %vm812, %v2489, %v2490
        %v2492 = vrot.slane %v2490, 4
        %v2493 = vrot.slane %v1890, 5
        %v2494 = vsel %vm812, %v2492, %v2493
        %v2495 = vrot.slane %v1891, 5
        %v2496 = vrot.slane %v2495, 4
        %v2497 = vrot.slane %v1892, 5
        %v2498 = vsel %vm812, %v2496, %v2497
        %v2499 = vrot.slane %v2497, 4
        %v2500 = vrot.slane %v1893, 5
        %v2501 = vsel %vm812, %v2499, %v2500
        %v2502 = vrot.slane %v1894, 5
        %v2503 = vrot.slane %v2502, 4
        %v2504 = vrot.slane %v1895, 5
        %v2505 = vsel %vm812, %v2503, %v2504
        %v2506 = vrot.slane %v2504, 4
        %v2507 = vrot.slane %v1896, 5
        %v2508 = vsel %vm812, %v2506, %v2507
        %v2509 = vrot.slane %v1897, 5
        %v2510 = vrot.slane %v2509, 4
        %v2511 = vrot.slane %v1898, 5
        %v2512 = vsel %vm812, %v2510, %v2511
        %v2513 = vrot.slane %v2511, 4
        %v2514 = vrot.slane %v1899, 5
        %v2515 = vsel %vm812, %v2513, %v2514
        %v2516 = vrot.slane %v1900, 5
        %v2517 = vrot.slane %v2516, 4
        %v2518 = vrot.slane %v1901, 5
        %v2519 = vsel %vm812, %v2517, %v2518
        %v2520 = vrot.slane %v2518, 4
        %v2521 = vrot.slane %v1902, 5
        %v2522 = vsel %vm812, %v2520, %v2521
        %v2523 = vrot.slane %v1903, 5
        %v2524 = vrot.slane %v2523, 4
        %v2525 = vrot.slane %v1904, 5
        %v2526 = vsel %vm812, %v2524, %v2525
        %v2527 = vrot.slane %v2525, 4
        %v2528 = vrot.slane %v1905, 5
        %v2529 = vsel %vm812, %v2527, %v2528
        %v2530 = vrot.slane %v1906, 5
        %v2531 = vrot.slane %v2530, 4
        %v2532 = vrot.slane %v1907, 5
        %v2533 = vsel %vm812, %v2531, %v2532
        %v2534 = vrot.slane %v2532, 4
        %v2535 = vrot.slane %v1908, 5
        %v2536 = vsel %vm812, %v2534, %v2535
        %s2537 = scalar_lea.vmem %s1, 128
        %v2538 = vld [vmem:[%s2537] sm:$0xf]
        %v2539 = vld [vmem:[%s2537 + $0x4] sm:$0xf]
        %v2540 = vld [vmem:[%s2537 + $0x8] sm:$0xf]
        %v2541 = vld [vmem:[%s2537 + $0xc] sm:$0xf]
        %v2542 = vunpack.c.l.b16 %v2484
        %v2543 = vunpack.c.l.b16 %v2487
        %v2544 = vunpack.c.l.b16 %v2491
        %v2545 = vunpack.c.l.b16 %v2494
        %v2546 = vunpack.c.l.b16 %v2498
        %v2547 = vunpack.c.l.b16 %v2501
        %v2548 = vunpack.c.l.b16 %v2505
        %v2549 = vunpack.c.l.b16 %v2508
        %v2550 = vunpack.c.l.b16 %v2512
        %v2551 = vunpack.c.l.b16 %v2515
        %v2552 = vunpack.c.l.b16 %v2519
        %v2553 = vunpack.c.l.b16 %v2522
        %v2554 = vunpack.c.l.b16 %v2526
        %v2555 = vunpack.c.l.b16 %v2529
        %v2556 = vunpack.c.l.b16 %v2533
        %v2557 = vunpack.c.l.b16 %v2536
        %v2558 = vpack.c.b16 %v2543, %v2542
        %v2559 = vpack.c.b16 %v2545, %v2544
        %v2560 = vpack.c.b16 %v2547, %v2546
        %v2561 = vpack.c.b16 %v2549, %v2548
        %v2562 = vpack.c.b16 %v2551, %v2550
        %v2563 = vpack.c.b16 %v2553, %v2552
        %v2564 = vpack.c.b16 %v2555, %v2554
        %v2565 = vpack.c.b16 %v2557, %v2556
        %v2570 = vunpack.c.l.b16 %v2538
        %v2571 = vunpack.c.l.b16 %v2539
        %v2572 = vunpack.c.l.b16 %v2540
        %v2573 = vunpack.c.l.b16 %v2541
        %v2574 = vpack.c.b16 %v2571, %v2570
        %v2575 = vpack.c.b16 %v2573, %v2572
        %v2579 = vsel %vm507, %v2558, 0
        %v2582 = vsel %vm507, %v2559, 0
        %v2585 = vsel %vm507, %v2560, 0
        %v2588 = vsel %vm507, %v2561, 0
        %v2591 = vsel %vm507, %v2562, 0
        %v2594 = vsel %vm507, %v2563, 0
        %v2597 = vsel %vm507, %v2564, 0
        %v2600 = vsel %vm507, %v2565, 0
        %2602 = vmatprep.subr.bf16.mxu0 0
        %2603 = vmatpush1.bf16.msra.mxu0 %v2574
        %2604 = vmatprep.subr.bf16.mxu0 0
        %2605 = vmatpush1.bf16.msra.mxu0 %v2575
        %2606 = vmatprep.subr.bf16.mxu0 0
        %2607 = vmatpush1.bf16.msra.mxu0 0
        %2608 = vmatprep.subr.bf16.mxu0 0
        %2609 = vmatpush1.bf16.msra.mxu0 0
        %2610 = vmatprep.subr.bf16.mxu0 0
        %2611 = vmatpush1.bf16.msra.mxu0 0
        %2612 = vmatprep.subr.bf16.mxu0 0
        %2613 = vmatpush1.bf16.msra.mxu0 0
        %2614 = vmatprep.subr.bf16.mxu0 0
        %2615 = vmatpush1.bf16.msra.mxu0 0
        %2616 = vmatprep.subr.bf16.mxu0 0
        %2617 = vmatpush1.bf16.msra.mxu0 0
        %2618 = vmatprep.subr.bf16.mxu0 0
        %2619 = vmatpush1.bf16.msra.mxu0 0
        %2620 = vmatprep.subr.bf16.mxu0 0
        %2621 = vmatpush1.bf16.msra.mxu0 0
        %2622 = vmatprep.subr.bf16.mxu0 0
        %2623 = vmatpush1.bf16.msra.mxu0 0
        %2624 = vmatprep.subr.bf16.mxu0 0
        %2625 = vmatpush1.bf16.msra.mxu0 0
        %2626 = vmatprep.subr.bf16.mxu0 0
        %2627 = vmatpush1.bf16.msra.mxu0 0
        %2628 = vmatprep.subr.bf16.mxu0 0
        %2629 = vmatpush1.bf16.msra.mxu0 0
        %2630 = vmatprep.subr.bf16.mxu0 0
        %2631 = vmatpush1.bf16.msra.mxu0 0
        %2632 = vmatprep.subr.bf16.mxu0 0
        %2633 = vmatpush1.bf16.msra.mxu0 0
        %2634 = vmatprep.mubr.bf16.mxu0 0
        %2635 = vmatmul.mubr.bf16.gmra.mrb[0].mxu0 %v2579
        %v2636 = vpop.f32.mrb[0].mxu0
        %v2637 = vadd.f32 0.0, %v2636
        %v2638 = vpop.f32.mrb[0].mxu0
        %v2639 = vpop.f32.mrb[0].mxu0
        %v2640 = vadd.f32 0.0, %v2639
        %v2641 = vpop.f32.mrb[0].mxu0
        %2642 = vmatprep.mubr.bf16.mxu0 0
        %2643 = vmatmul.mubr.bf16.gmra.mrb[0].mxu0 %v2582
        %v2644 = vpop.f32.mrb[0].mxu0
        %v2645 = vadd.f32 0.0, %v2644
        %v2646 = vpop.f32.mrb[0].mxu0
        %v2647 = vpop.f32.mrb[0].mxu0
        %v2648 = vadd.f32 0.0, %v2647
        %v2649 = vpop.f32.mrb[0].mxu0
        %2650 = vmatprep.mubr.bf16.mxu0 0
        %2651 = vmatmul.mubr.bf16.gmra.mrb[0].mxu0 %v2585
        %v2652 = vpop.f32.mrb[0].mxu0
        %v2653 = vadd.f32 0.0, %v2652
        %v2654 = vpop.f32.mrb[0].mxu0
        %v2655 = vpop.f32.mrb[0].mxu0
        %v2656 = vadd.f32 0.0, %v2655
        %v2657 = vpop.f32.mrb[0].mxu0
        %2658 = vmatprep.mubr.bf16.mxu0 0
        %2659 = vmatmul.mubr.bf16.gmra.mrb[0].mxu0 %v2588
        %v2660 = vpop.f32.mrb[0].mxu0
        %v2661 = vadd.f32 0.0, %v2660
        %v2662 = vpop.f32.mrb[0].mxu0
        %v2663 = vpop.f32.mrb[0].mxu0
        %v2664 = vadd.f32 0.0, %v2663
        %v2665 = vpop.f32.mrb[0].mxu0
        %2666 = vmatprep.mubr.bf16.mxu0 0
        %2667 = vmatmul.mubr.bf16.gmra.mrb[0].mxu0 %v2591
        %v2668 = vpop.f32.mrb[0].mxu0
        %v2669 = vadd.f32 0.0, %v2668
        %v2670 = vpop.f32.mrb[0].mxu0
        %v2671 = vpop.f32.mrb[0].mxu0
        %v2672 = vadd.f32 0.0, %v2671
        %v2673 = vpop.f32.mrb[0].mxu0
        %2674 = vmatprep.mubr.bf16.mxu0 0
        %2675 = vmatmul.mubr.bf16.gmra.mrb[0].mxu0 %v2594
        %v2676 = vpop.f32.mrb[0].mxu0
        %v2677 = vadd.f32 0.0, %v2676
        %v2678 = vpop.f32.mrb[0].mxu0
        %v2679 = vpop.f32.mrb[0].mxu0
        %v2680 = vadd.f32 0.0, %v2679
        %v2681 = vpop.f32.mrb[0].mxu0
        %2682 = vmatprep.mubr.bf16.mxu0 0
        %2683 = vmatmul.mubr.bf16.gmra.mrb[0].mxu0 %v2597
        %v2684 = vpop.f32.mrb[0].mxu0
        %v2685 = vadd.f32 0.0, %v2684
        %v2686 = vpop.f32.mrb[0].mxu0
        %v2687 = vpop.f32.mrb[0].mxu0
        %v2688 = vadd.f32 0.0, %v2687
        %v2689 = vpop.f32.mrb[0].mxu0
        %2690 = vmatprep.mubr.bf16.mxu0 0
        %2691 = vmatmul.mubr.bf16.gmra.mrb[0].mxu0 %v2600
        %v2692 = vpop.f32.mrb[0].mxu0
        %v2693 = vadd.f32 0.0, %v2692
        %v2694 = vpop.f32.mrb[0].mxu0
        %v2695 = vpop.f32.mrb[0].mxu0
        %v2696 = vadd.f32 0.0, %v2695
        %v2697 = vpop.f32.mrb[0].mxu0
        %2698 = vdwg.mxu0
        %v2699 = vadd.f32 %v2457, %v2637
        %v2700 = vadd.f32 %v2458, %v2640
        %v2701 = vadd.f32 %v2459, %v2645
        %v2702 = vadd.f32 %v2460, %v2648
        %v2703 = vadd.f32 %v2461, %v2653
        %v2704 = vadd.f32 %v2462, %v2656
        %v2705 = vadd.f32 %v2463, %v2661
        %v2706 = vadd.f32 %v2464, %v2664
        %v2707 = vadd.f32 %v2465, %v2669
        %v2708 = vadd.f32 %v2466, %v2672
        %v2709 = vadd.f32 %v2467, %v2677
        %v2710 = vadd.f32 %v2468, %v2680
        %v2711 = vadd.f32 %v2469, %v2685
        %v2712 = vadd.f32 %v2470, %v2688
        %v2713 = vadd.f32 %v2471, %v2693
        %v2714 = vadd.f32 %v2472, %v2696
        %v2715 = vld [vmem:[%s2] sm:$0x1]
        %v2717 = vlaneseq
        %v2718 = vshrl.u32 %v2717, 7
        %v2719 = vsub.s32 0, %v2718
        %v2720 = vrot.slane %v2715, %v2719
        %v2722 = vadd.f32 %v2699, %v2720
        %v2723 = vadd.f32 %v2700, %v2720
        %v2724 = vadd.f32 %v2701, %v2720
        %v2725 = vadd.f32 %v2702, %v2720
        %v2726 = vadd.f32 %v2703, %v2720
        %v2727 = vadd.f32 %v2704, %v2720
        %v2728 = vadd.f32 %v2705, %v2720
        %v2729 = vadd.f32 %v2706, %v2720
        %v2730 = vadd.f32 %v2707, %v2720
        %v2731 = vadd.f32 %v2708, %v2720
        %v2732 = vadd.f32 %v2709, %v2720
        %v2733 = vadd.f32 %v2710, %v2720
        %v2734 = vadd.f32 %v2711, %v2720
        %v2735 = vadd.f32 %v2712, %v2720
        %v2736 = vadd.f32 %v2713, %v2720
        %v2737 = vadd.f32 %v2714, %v2720
        %v2738 = vmax.f32 %v2722, 0.0
        %v2739 = vmax.f32 %v2723, 0.0
        %v2740 = vmax.f32 %v2724, 0.0
        %v2741 = vmax.f32 %v2725, 0.0
        %v2742 = vmax.f32 %v2726, 0.0
        %v2743 = vmax.f32 %v2727, 0.0
        %v2744 = vmax.f32 %v2728, 0.0
        %v2745 = vmax.f32 %v2729, 0.0
        %v2746 = vmax.f32 %v2730, 0.0
        %v2747 = vmax.f32 %v2731, 0.0
        %v2748 = vmax.f32 %v2732, 0.0
        %v2749 = vmax.f32 %v2733, 0.0
        %v2750 = vmax.f32 %v2734, 0.0
        %v2751 = vmax.f32 %v2735, 0.0
        %v2752 = vmax.f32 %v2736, 0.0
        %v2753 = vmax.f32 %v2737, 0.0
        %v2754 = vpack.c.bf16 %v2739, %v2738
        %v2755 = vpack.c.bf16 %v2741, %v2740
        %v2756 = vpack.c.bf16 %v2743, %v2742
        %v2757 = vpack.c.bf16 %v2745, %v2744
        %v2758 = vpack.c.bf16 %v2747, %v2746
        %v2759 = vpack.c.bf16 %v2749, %v2748
        %v2760 = vpack.c.bf16 %v2751, %v2750
        %v2761 = vpack.c.bf16 %v2753, %v2752
        %v2762 = vld [vmem:[%s3] sm:$0xf]
        %v2763 = vld [vmem:[%s3 + $0x4] sm:$0xf]
        %v2764 = vld [vmem:[%s3 + $0x8] sm:$0xf]
        %v2765 = vld [vmem:[%s3 + $0xc] sm:$0xf]
        %v2766 = vld [vmem:[%s4] sm:$0x1]
        %v2768 = vlaneseq
        %v2769 = vshrl.u32 %v2768, 7
        %v2770 = vsub.s32 0, %v2769
        %v2771 = vrot.slane %v2766, %v2770
        %v2777 = vunpack.c.l.b16 %v2762
        %v2778 = vunpack.c.l.b16 %v2763
        %v2779 = vunpack.c.l.b16 %v2764
        %v2780 = vunpack.c.l.b16 %v2765
        %v2781 = vpack.c.b16 %v2778, %v2777
        %v2782 = vpack.c.b16 %v2780, %v2779
        %v2786 = vsel %vm507, %v2754, 0
        %v2789 = vsel %vm507, %v2755, 0
        %v2792 = vsel %vm507, %v2756, 0
        %v2795 = vsel %vm507, %v2757, 0
        %v2798 = vsel %vm507, %v2758, 0
        %v2801 = vsel %vm507, %v2759, 0
        %v2804 = vsel %vm507, %v2760, 0
        %v2807 = vsel %vm507, %v2761, 0
        %2809 = vmatprep.subr.bf16.mxu0 0
        %2810 = vmatpush1.bf16.msra.mxu0 %v2781
        %2811 = vmatprep.subr.bf16.mxu0 0
        %2812 = vmatpush1.bf16.msra.mxu0 %v2782
        %2813 = vmatprep.subr.bf16.mxu0 0
        %2814 = vmatpush1.bf16.msra.mxu0 0
        %2815 = vmatprep.subr.bf16.mxu0 0
        %2816 = vmatpush1.bf16.msra.mxu0 0
        %2817 = vmatprep.subr.bf16.mxu0 0
        %2818 = vmatpush1.bf16.msra.mxu0 0
        %2819 = vmatprep.subr.bf16.mxu0 0
        %2820 = vmatpush1.bf16.msra.mxu0 0
        %2821 = vmatprep.subr.bf16.mxu0 0
        %2822 = vmatpush1.bf16.msra.mxu0 0
        %2823 = vmatprep.subr.bf16.mxu0 0
        %2824 = vmatpush1.bf16.msra.mxu0 0
        %2825 = vmatprep.subr.bf16.mxu0 0
        %2826 = vmatpush1.bf16.msra.mxu0 0
        %2827 = vmatprep.subr.bf16.mxu0 0
        %2828 = vmatpush1.bf16.msra.mxu0 0
        %2829 = vmatprep.subr.bf16.mxu0 0
        %2830 = vmatpush1.bf16.msra.mxu0 0
        %2831 = vmatprep.subr.bf16.mxu0 0
        %2832 = vmatpush1.bf16.msra.mxu0 0
        %2833 = vmatprep.subr.bf16.mxu0 0
        %2834 = vmatpush1.bf16.msra.mxu0 0
        %2835 = vmatprep.subr.bf16.mxu0 0
        %2836 = vmatpush1.bf16.msra.mxu0 0
        %2837 = vmatprep.subr.bf16.mxu0 0
        %2838 = vmatpush1.bf16.msra.mxu0 0
        %2839 = vmatprep.subr.bf16.mxu0 0
        %2840 = vmatpush1.bf16.msra.mxu0 0
        %2841 = vmatprep.mubr.bf16.mxu0 0
        %2842 = vmatmul.mubr.bf16.gmra.mrb[0].mxu0 %v2786
        %v2843 = vpop.f32.mrb[0].mxu0
        %v2844 = vadd.f32 %v2771, %v2843
        %v2845 = vpop.f32.mrb[0].mxu0
        %v2846 = vpop.f32.mrb[0].mxu0
        %v2847 = vadd.f32 %v2771, %v2846
        %v2848 = vpop.f32.mrb[0].mxu0
        %2849 = vmatprep.mubr.bf16.mxu0 0
        %2850 = vmatmul.mubr.bf16.gmra.mrb[0].mxu0 %v2789
        %v2851 = vpop.f32.mrb[0].mxu0
        %v2852 = vadd.f32 %v2771, %v2851
        %v2853 = vpop.f32.mrb[0].mxu0
        %v2854 = vpop.f32.mrb[0].mxu0
        %v2855 = vadd.f32 %v2771, %v2854
        %v2856 = vpop.f32.mrb[0].mxu0
        %2857 = vmatprep.mubr.bf16.mxu0 0
        %2858 = vmatmul.mubr.bf16.gmra.mrb[0].mxu0 %v2792
        %v2859 = vpop.f32.mrb[0].mxu0
        %v2860 = vadd.f32 %v2771, %v2859
        %v2861 = vpop.f32.mrb[0].mxu0
        %v2862 = vpop.f32.mrb[0].mxu0
        %v2863 = vadd.f32 %v2771, %v2862
        %v2864 = vpop.f32.mrb[0].mxu0
        %2865 = vmatprep.mubr.bf16.mxu0 0
        %2866 = vmatmul.mubr.bf16.gmra.mrb[0].mxu0 %v2795
        %v2867 = vpop.f32.mrb[0].mxu0
        %v2868 = vadd.f32 %v2771, %v2867
        %v2869 = vpop.f32.mrb[0].mxu0
        %v2870 = vpop.f32.mrb[0].mxu0
        %v2871 = vadd.f32 %v2771, %v2870
        %v2872 = vpop.f32.mrb[0].mxu0
        %2873 = vmatprep.mubr.bf16.mxu0 0
        %2874 = vmatmul.mubr.bf16.gmra.mrb[0].mxu0 %v2798
        %v2875 = vpop.f32.mrb[0].mxu0
        %v2876 = vadd.f32 %v2771, %v2875
        %v2877 = vpop.f32.mrb[0].mxu0
        %v2878 = vpop.f32.mrb[0].mxu0
        %v2879 = vadd.f32 %v2771, %v2878
        %v2880 = vpop.f32.mrb[0].mxu0
        %2881 = vmatprep.mubr.bf16.mxu0 0
        %2882 = vmatmul.mubr.bf16.gmra.mrb[0].mxu0 %v2801
        %v2883 = vpop.f32.mrb[0].mxu0
        %v2884 = vadd.f32 %v2771, %v2883
        %v2885 = vpop.f32.mrb[0].mxu0
        %v2886 = vpop.f32.mrb[0].mxu0
        %v2887 = vadd.f32 %v2771, %v2886
        %v2888 = vpop.f32.mrb[0].mxu0
        %2889 = vmatprep.mubr.bf16.mxu0 0
        %2890 = vmatmul.mubr.bf16.gmra.mrb[0].mxu0 %v2804
        %v2891 = vpop.f32.mrb[0].mxu0
        %v2892 = vadd.f32 %v2771, %v2891
        %v2893 = vpop.f32.mrb[0].mxu0
        %v2894 = vpop.f32.mrb[0].mxu0
        %v2895 = vadd.f32 %v2771, %v2894
        %v2896 = vpop.f32.mrb[0].mxu0
        %2897 = vmatprep.mubr.bf16.mxu0 0
        %2898 = vmatmul.mubr.bf16.gmra.mrb[0].mxu0 %v2807
        %v2899 = vpop.f32.mrb[0].mxu0
        %v2900 = vadd.f32 %v2771, %v2899
        %v2901 = vpop.f32.mrb[0].mxu0
        %v2902 = vpop.f32.mrb[0].mxu0
        %v2903 = vadd.f32 %v2771, %v2902
        %v2904 = vpop.f32.mrb[0].mxu0
        %2905 = vdwg.mxu0
        %2906 = vst [vmem:[%s231] sm:$0xff] %v2844
        %2907 = vst [vmem:[%s231 + $0x8] sm:$0xff] %v2847
        %2908 = vst [vmem:[%s231 + $0x10] sm:$0xff] %v2852
        %2909 = vst [vmem:[%s231 + $0x18] sm:$0xff] %v2855
        %2910 = vst [vmem:[%s231 + $0x20] sm:$0xff] %v2860
        %2911 = vst [vmem:[%s231 + $0x28] sm:$0xff] %v2863
        %2912 = vst [vmem:[%s231 + $0x30] sm:$0xff] %v2868
        %2913 = vst [vmem:[%s231 + $0x38] sm:$0xff] %v2871
        %2914 = vst [vmem:[%s231 + $0x40] sm:$0xff] %v2876
        %2915 = vst [vmem:[%s231 + $0x48] sm:$0xff] %v2879
        %2916 = vst [vmem:[%s231 + $0x50] sm:$0xff] %v2884
        %2917 = vst [vmem:[%s231 + $0x58] sm:$0xff] %v2887
        %2918 = vst [vmem:[%s231 + $0x60] sm:$0xff] %v2892
        %2919 = vst [vmem:[%s231 + $0x68] sm:$0xff] %v2895
        %2920 = vst [vmem:[%s231 + $0x70] sm:$0xff] %v2900
        %2921 = vst [vmem:[%s231 + $0x78] sm:$0xff] %v2903
        %s2922 = sand.u32 %s151, 1
        %s2923 = scalar_lea.sflag [#allocation3], %s2922
        %s2924 = sand.u32 %s151, 1
        %s2925 = smul.addr %s2924, 128
        %s2926 = scalar_lea.vmem [#allocation2], %s2925
        // Predicated region
        $region41: #{tpu_custom_call.1} parent=39 // pred_check
          %p2927 = pneg %p161
        $region42: #{tpu_custom_call.1} parent=39 // pred_check_branch
          %2929 = sbr.rel (%p2927) target = $region44
        $region43: #{tpu_custom_call.1} parent=39 // pred_region
          %s2930 = smul.u32 16, %s24
          %s2932 = ssub.s32 2048, 2048
          %2933 = vsyncadd %s2923, %s2932
          %s2934 = smul.addr %s23, 32
          %s2935 = sadd.s32 %s2930, %s2934
          %s2936 = smul.addr %s2935, 128
          %s2937 = scalar_lea.hbm %s5, %s2936
          %s2938 = sshll.u32 %s2926, 4
          %s2939 = int_to_ptr.vmem [resolvable:$true] %s2938
          %2944 = dma.vmem_to_hbm [thread:$0]  %s2939, 2048, %s2937, %s2923, 128, 128, 8
        $region44: #{tpu_custom_call.1} parent=39 // pred_fallthru
          _
      $region40: #{tpu_custom_call.1} parent=5 // pred_fallthru
        _
      %p2945 = scmp.le.s32.totalorder 2, %s14
      // Predicated region
      $region45: #{tpu_custom_call.1} parent=5 // pred_check
        %p2946 = pneg %p2945
      $region46: #{tpu_custom_call.1} parent=5 // pred_check_branch
        %2948 = sbr.rel (%p2946) target = $region48
      $region47: #{tpu_custom_call.1} parent=5 // pred_region
        %s2949 = ssub.s32 %s14, 2
        // Predicated region
        $region49: #{tpu_custom_call.1} parent=47 // pred_check
          %p2950 = pneg %p167
        $region50: #{tpu_custom_call.1} parent=47 // pred_check_branch
          %2952 = sbr.rel (%p2950) target = $region52
        $region51: #{tpu_custom_call.1} parent=47 // pred_region
          %s2953 = sand.u32 %s152, 1
          %s2954 = scalar_lea.sflag [#allocation3], %s2953
          %s2955 = sand.u32 %s152, 1
          %s2956 = smul.addr %s2955, 128
          %s2957 = scalar_lea.vmem [#allocation2], %s2956
          %2958 = dma.done %s2954, 2048
        $region52: #{tpu_custom_call.1} parent=47 // pred_fallthru
          _
      $region48: #{tpu_custom_call.1} parent=5 // pred_fallthru
        _
    $region6: #{tpu_custom_call.1} parent=1 // loop_footer
      %s18 = sadd.s32 1, %s14
    $region7: #{tpu_custom_call.1} parent=1 // loop_footer_branch
      %13 = sbr.rel target = $region3
    $region8: #{tpu_custom_call.1} parent=1 // loop_exit
      _
    %2959 = vsyncpa [#allocation3], 1
    %s2960 = scalar_lea.sflag [#allocation3], 1
    %2961 = vsyncpa %s2960, 1

</llo_original>
